<compile_context>
chip_gen: v6e
topology: v6e:2x2x1
jax: 0.10.0
libtpu: 0.0.40
codegen_flags: <defaults>
</compile_context>

<pallas_src>
import functools

import jax
import jax.numpy as jnp
from jax import lax
from jax.experimental import pallas as pl
from jax.experimental.pallas import tpu as pltpu

_EPS = 1e-5


# ---------------------------------------------------------------------------
# In-kernel helpers (operate on VMEM values)
# ---------------------------------------------------------------------------
def _pad_hw1(x):
    """Zero-pad an (H, W, C) tile by 1 on each spatial side, entirely in VMEM."""
    H, W, C = x.shape
    zrow = jnp.zeros((1, W, C), x.dtype)
    xp = jnp.concatenate([zrow, x, zrow], axis=0)          # (H+2, W, C)
    zcol = jnp.zeros((H + 2, 1, C), xp.dtype)
    return jnp.concatenate([zcol, xp, zcol], axis=1)       # (H+2, W+2, C)


def _conv3x3_matmul(x_bf16, w2d_ref, H, W):
    """3x3 conv (pad=1, stride=1, no bias) as ONE K=9*C MXU matmul.

    x_bf16: (H, W, C) bf16 value; w2d_ref: (9*C, Cout) bf16 ref (tap-major HWIO).
    Returns (H*W, Cout) f32 accumulator.
    """
    C = x_bf16.shape[-1]
    xp = _pad_hw1(x_bf16)                                  # (H+2, W+2, C)
    taps = [xp[ky:ky + H, kx:kx + W, :].reshape(H * W, C)
            for ky in range(3) for kx in range(3)]
    patch = jnp.concatenate(taps, axis=-1)                 # (H*W, 9*C) bf16 im2col
    return jnp.dot(patch, w2d_ref[...],
                   preferred_element_type=jnp.float32)     # f32 accumulate on MXU


# ---------------------------------------------------------------------------
# Fused ConvBlockRes kernel (+ optional fused AvgPool2d epilogue)
# ---------------------------------------------------------------------------
def _conv_block_res_kernel(*refs, H, W, cin, cout, has_shortcut, pool_k):
    it = iter(refs)
    x_ref = next(it)
    w1_ref, s1_ref, b1_ref = next(it), next(it), next(it)
    w2_ref, s2_ref, b2_ref = next(it), next(it), next(it)
    wsc_ref = bsc_ref = None
    if has_shortcut:
        wsc_ref, bsc_ref = next(it), next(it)
    out_ref = next(it)
    pool_ref = next(it) if pool_k is not None else None

    x = x_ref[...].astype(jnp.float32)                     # (H, W, cin)
    xb = x.astype(jnp.bfloat16)                            # MXU operands in bf16

    # conv1 -> folded BN -> ReLU   (epilogue in f32)
    acc1 = _conv3x3_matmul(xb, w1_ref, H, W)               # (H*W, cout)
    h1 = jnp.maximum(acc1 * s1_ref[...] + b1_ref[...], 0.0)

    # conv2 -> folded BN -> ReLU   (conv1 output stays in VMEM, never hits HBM)
    h1b = h1.reshape(H, W, cout).astype(jnp.bfloat16)
    acc2 = _conv3x3_matmul(h1b, w2_ref, H, W)
    h2 = jnp.maximum(acc2 * s2_ref[...] + b2_ref[...], 0.0)

    # shortcut (1x1 conv + bias) or identity, then residual add
    if has_shortcut:
        res = jnp.dot(xb.reshape(H * W, cin), wsc_ref[...],
                      preferred_element_type=jnp.float32) + bsc_ref[...]
    else:
        res = x.reshape(H * W, cout)
    y = h2 + res                                           # (H*W, cout) f32

    out_ref[...] = y.reshape(H, W, cout).astype(out_ref.dtype)

    # fused AvgPool2d(pool_k) epilogue: pure VPU reduction, no extra HBM trip
    if pool_k is not None:
        k = pool_k
        Ho, Wo = H // k, W // k
        t = y.reshape(H, Wo, k, cout).sum(axis=2)          # sum over W window
        p = t.reshape(Ho, k, Wo, cout).sum(axis=1) * (1.0 / (k * k))
        pool_ref[...] = p.astype(pool_ref.dtype)


# ---------------------------------------------------------------------------
# Wrapper: one pallas_call per ConvBlockRes (grid over batch)
# ---------------------------------------------------------------------------
def conv_block_res(x, p, pool_k=None):
    B, H, W, Cin = x.shape
    Cout = p['s1'].shape[-1]
    has_shortcut = 'wsc' in p
    if pool_k is not None:
        assert H % pool_k == 0 and W % pool_k == 0, "AvgPool2d expects divisible H, W"

    kernel = functools.partial(_conv_block_res_kernel, H=H, W=W, cin=Cin,
                               cout=Cout, has_shortcut=has_shortcut, pool_k=pool_k)

    def full(shape):     # whole (small) parameter array, same block every step
        return pl.BlockSpec(shape, lambda b: (0,) * len(shape))

    in_specs = [
        pl.BlockSpec((pl.Squeezed(), H, W, Cin), lambda b: (b, 0, 0, 0)),
        full((9 * Cin, Cout)), full((1, Cout)), full((1, Cout)),
        full((9 * Cout, Cout)), full((1, Cout)), full((1, Cout)),
    ]
    args = [x, p['w1'], p['s1'], p['b1'], p['w2'], p['s2'], p['b2']]
    if has_shortcut:
        in_specs += [full((Cin, Cout)), full((1, Cout))]
        args += [p['wsc'], p['bsc']]

    out_spec = pl.BlockSpec((pl.Squeezed(), H, W, Cout), lambda b: (b, 0, 0, 0))
    out_shape = jax.ShapeDtypeStruct((B, H, W, Cout), x.dtype)
    cp = pltpu.CompilerParams(dimension_semantics=("parallel",))

    if pool_k is None:
        out = pl.pallas_call(kernel, out_shape=out_shape, grid=(B,),
                             in_specs=in_specs, out_specs=out_spec,
                             compiler_params=cp)(*args)
        return out, None

    Ho, Wo = H // pool_k, W // pool_k
    pool_spec = pl.BlockSpec((pl.Squeezed(), Ho, Wo, Cout), lambda b: (b, 0, 0, 0))
    pool_shape = jax.ShapeDtypeStruct((B, Ho, Wo, Cout), x.dtype)
    out, pooled = pl.pallas_call(kernel, out_shape=(out_shape, pool_shape), grid=(B,),
                                 in_specs=in_specs, out_specs=(out_spec, pool_spec),
                                 compiler_params=cp)(*args)
    return out, pooled


def res_encoder_block_forward(x, block_params, kernel_size):
    n = len(block_params)
    pooled = None
    for i, p in enumerate(block_params):
        pk = kernel_size if (i == n - 1 and kernel_size is not None) else None
        x, pooled = conv_block_res(x, p, pool_k=pk)
    if kernel_size is not None:
        return x, pooled
    return x


# ---------------------------------------------------------------------------
# Parameters (BatchNorm folded to inference-mode scale/bias)
# ---------------------------------------------------------------------------
def _fold_bn(gamma, beta, mean, var):
    scale = gamma / jnp.sqrt(var + _EPS)
    return scale.reshape(1, -1), (beta - mean * scale).reshape(1, -1)


def init_conv_block_params(key, cin, cout):
    keys = jax.random.split(key, 12)

    def bn(ks):
        g = 1.0 + 0.1 * jax.random.normal(ks[0], (cout,), jnp.float32)
        b = 0.1 * jax.random.normal(ks[1], (cout,), jnp.float32)
        m = 0.1 * jax.random.normal(ks[2], (cout,), jnp.float32)
        v = 1.0 + 0.5 * jnp.abs(jax.random.normal(ks[3], (cout,), jnp.float32))
        return g, b, m, v

    w1 = 0.2 * jax.random.normal(keys[0], (3, 3, cin, cout), jnp.float32)   # HWIO
    w2 = 0.2 * jax.random.normal(keys[1], (3, 3, cout, cout), jnp.float32)
    s1, b1 = _fold_bn(*bn(keys[2:6]))
    s2, b2 = _fold_bn(*bn(keys[6:10]))
    p = {
        'w1': w1.reshape(9 * cin, cout).astype(jnp.bfloat16), 'w1_hwio': w1,
        'w2': w2.reshape(9 * cout, cout).astype(jnp.bfloat16), 'w2_hwio': w2,
        's1': s1, 'b1': b1, 's2': s2, 'b2': b2,
    }
    if cin != cout:
        wsc = 0.2 * jax.random.normal(keys[10], (1, 1, cin, cout), jnp.float32)
        bsc = 0.1 * jax.random.normal(keys[11], (cout,), jnp.float32)
        p['wsc'] = wsc.reshape(cin, cout).astype(jnp.bfloat16)
        p['wsc_hwio'] = wsc
        p['bsc'] = bsc.reshape(1, cout)
    return p


# ---------------------------------------------------------------------------
# Pure-JAX reference (same bf16-operand / f32-accumulate policy as the kernel)
# ---------------------------------------------------------------------------
def _ref_conv(x, w_hwio, padding):
    return lax.conv_general_dilated(
        x.astype(jnp.bfloat16), w_hwio.astype(jnp.bfloat16), (1, 1), padding,
        dimension_numbers=('NHWC', 'HWIO', 'NHWC'),
        preferred_element_type=jnp.float32)


def ref_conv_block_res(x, p):
    h = jnp.maximum(_ref_conv(x, p['w1_hwio'], ((1, 1), (1, 1))) * p['s1'] + p['b1'], 0.0)
    h = jnp.maximum(_ref_conv(h, p['w2_hwio'], ((1, 1), (1, 1))) * p['s2'] + p['b2'], 0.0)
    if 'wsc_hwio' in p:
        res = _ref_conv(x, p['wsc_hwio'], ((0, 0), (0, 0))) + p['bsc']
    else:
        res = x
    return h + res


def ref_res_encoder_block(x, block_params, k):
    for p in block_params:
        x = ref_conv_block_res(x, p)
    if k is None:
        return x
    B, H, W, C = x.shape
    pooled = x[:, :(H // k) * k, :(W // k) * k, :].reshape(
        B, H // k, k, W // k, k, C).mean(axis=(2, 4))
    return x, pooled


# ---------------------------------------------------------------------------
if __name__ == "__main__":
    key = jax.random.PRNGKey(0)
    B, Cin, Cout, H, W = 2, 4, 8, 16, 16
    n_blocks, kernel_size = 2, 2

    kx, kp = jax.random.split(key)
    x_nchw = jax.random.normal(kx, (B, Cin, H, W), jnp.float32)   # PyTorch NCHW input
    x = jnp.transpose(x_nchw, (0, 2, 3, 1))                       # -> NHWC for the kernels

    pkeys = jax.random.split(kp, n_blocks)
    blocks = [init_conv_block_params(pkeys[0], Cin, Cout)]
    for i in range(1, n_blocks):
        blocks.append(init_conv_block_params(pkeys[i], Cout, Cout))

    out, pooled = res_encoder_block_forward(x, blocks, kernel_size)
    out = jax.block_until_ready(out)
    pooled = jax.block_until_ready(pooled)

    ref_out, ref_pooled = ref_res_encoder_block(x, blocks, kernel_size)

    assert out.shape == (B, H, W, Cout)
    assert pooled.shape == (B, H // kernel_size, W // kernel_size, Cout)
    # bf16 MXU operands => compare against the bf16-operand reference (tol covers
    # accumulation-order + bf16 rounding-boundary differences only).
    assert jnp.allclose(out, ref_out, rtol=2e-2, atol=2e-2), \
        float(jnp.max(jnp.abs(out - ref_out)))
    assert jnp.allclose(pooled, ref_pooled, rtol=2e-2, atol=2e-2), \
        float(jnp.max(jnp.abs(pooled - ref_pooled)))

    print("KERNEL_OK")
</pallas_src>

<mosaic_0001>
module attributes {stable_mosaic.version = 11 : i64} {
  func.func @_conv_block_res_kernel(%arg0: i32, %arg1: memref<1x16x16x4xf32, #tpu.memory_space<vmem>>, %arg2: memref<36x8xbf16, #tpu.memory_space<vmem>>, %arg3: memref<1x8xf32, #tpu.memory_space<vmem>>, %arg4: memref<1x8xf32, #tpu.memory_space<vmem>>, %arg5: memref<72x8xbf16, #tpu.memory_space<vmem>>, %arg6: memref<1x8xf32, #tpu.memory_space<vmem>>, %arg7: memref<1x8xf32, #tpu.memory_space<vmem>>, %arg8: memref<4x8xbf16, #tpu.memory_space<vmem>>, %arg9: memref<1x8xf32, #tpu.memory_space<vmem>>, %arg10: memref<1x16x16x8xf32, #tpu.memory_space<vmem>>) attributes {dimension_semantics = [#tpu.dimension_semantics<parallel>], iteration_bounds = array<i64: 2>, scalar_prefetch = 0 : i64, scratch_operands = 0 : i64, tpu.core_type = #tpu.core_type<tc>, window_params = [{transform_indices = @transform_0, window_bounds = array<i64: 1, 16, 16, 4>}, {pipeline_mode = #tpu.pipeline_mode<synchronous>, transform_indices = @transform_1, window_bounds = array<i64: 36, 8>}, {pipeline_mode = #tpu.pipeline_mode<synchronous>, transform_indices = @transform_2, window_bounds = array<i64: 1, 8>}, {pipeline_mode = #tpu.pipeline_mode<synchronous>, transform_indices = @transform_3, window_bounds = array<i64: 1, 8>}, {pipeline_mode = #tpu.pipeline_mode<synchronous>, transform_indices = @transform_4, window_bounds = array<i64: 72, 8>}, {pipeline_mode = #tpu.pipeline_mode<synchronous>, transform_indices = @transform_5, window_bounds = array<i64: 1, 8>}, {pipeline_mode = #tpu.pipeline_mode<synchronous>, transform_indices = @transform_6, window_bounds = array<i64: 1, 8>}, {pipeline_mode = #tpu.pipeline_mode<synchronous>, transform_indices = @transform_7, window_bounds = array<i64: 4, 8>}, {pipeline_mode = #tpu.pipeline_mode<synchronous>, transform_indices = @transform_8, window_bounds = array<i64: 1, 8>}, {transform_indices = @transform_9, window_bounds = array<i64: 1, 16, 16, 8>}]} {
    %c0 = arith.constant 0 : index
    %c0_0 = arith.constant 0 : index
    %c0_1 = arith.constant 0 : index
    %c0_2 = arith.constant 0 : index
    %0 = vector.load %arg1[%c0, %c0_0, %c0_1, %c0_2] : memref<1x16x16x4xf32, #tpu.memory_space<vmem>>, vector<1x16x16x4xf32>
    %1 = vector.shape_cast %0 : vector<1x16x16x4xf32> to vector<16x16x4xf32>
    %2 = arith.truncf %1 : vector<16x16x4xf32> to vector<16x16x4xbf16>
    %cst = arith.constant 0.000000e+00 : bf16
    %3 = vector.broadcast %cst : bf16 to vector<1x16x4xbf16>
    %4 = tpu.concatenate %3, %2, %3 in 0 : vector<1x16x4xbf16>, vector<16x16x4xbf16>, vector<1x16x4xbf16> -> vector<18x16x4xbf16>
    %cst_3 = arith.constant 0.000000e+00 : bf16
    %5 = vector.broadcast %cst_3 : bf16 to vector<18x1x4xbf16>
    %6 = tpu.concatenate %5, %4, %5 in 1 : vector<18x1x4xbf16>, vector<18x16x4xbf16>, vector<18x1x4xbf16> -> vector<18x18x4xbf16>
    %7 = vector.extract_strided_slice %6 {offsets = [0, 0, 0], sizes = [16, 16, 4], strides = [1, 1, 1]} : vector<18x18x4xbf16> to vector<16x16x4xbf16>
    %8 = vector.shape_cast %7 : vector<16x16x4xbf16> to vector<256x4xbf16>
    %9 = vector.extract_strided_slice %6 {offsets = [0, 1, 0], sizes = [16, 16, 4], strides = [1, 1, 1]} : vector<18x18x4xbf16> to vector<16x16x4xbf16>
    %10 = vector.shape_cast %9 : vector<16x16x4xbf16> to vector<256x4xbf16>
    %11 = vector.extract_strided_slice %6 {offsets = [0, 2, 0], sizes = [16, 16, 4], strides = [1, 1, 1]} : vector<18x18x4xbf16> to vector<16x16x4xbf16>
    %12 = vector.shape_cast %11 : vector<16x16x4xbf16> to vector<256x4xbf16>
    %13 = vector.extract_strided_slice %6 {offsets = [1, 0, 0], sizes = [16, 16, 4], strides = [1, 1, 1]} : vector<18x18x4xbf16> to vector<16x16x4xbf16>
    %14 = vector.shape_cast %13 : vector<16x16x4xbf16> to vector<256x4xbf16>
    %15 = vector.extract_strided_slice %6 {offsets = [1, 1, 0], sizes = [16, 16, 4], strides = [1, 1, 1]} : vector<18x18x4xbf16> to vector<16x16x4xbf16>
    %16 = vector.shape_cast %15 : vector<16x16x4xbf16> to vector<256x4xbf16>
    %17 = vector.extract_strided_slice %6 {offsets = [1, 2, 0], sizes = [16, 16, 4], strides = [1, 1, 1]} : vector<18x18x4xbf16> to vector<16x16x4xbf16>
    %18 = vector.shape_cast %17 : vector<16x16x4xbf16> to vector<256x4xbf16>
    %19 = vector.extract_strided_slice %6 {offsets = [2, 0, 0], sizes = [16, 16, 4], strides = [1, 1, 1]} : vector<18x18x4xbf16> to vector<16x16x4xbf16>
    %20 = vector.shape_cast %19 : vector<16x16x4xbf16> to vector<256x4xbf16>
    %21 = vector.extract_strided_slice %6 {offsets = [2, 1, 0], sizes = [16, 16, 4], strides = [1, 1, 1]} : vector<18x18x4xbf16> to vector<16x16x4xbf16>
    %22 = vector.shape_cast %21 : vector<16x16x4xbf16> to vector<256x4xbf16>
    %23 = vector.extract_strided_slice %6 {offsets = [2, 2, 0], sizes = [16, 16, 4], strides = [1, 1, 1]} : vector<18x18x4xbf16> to vector<16x16x4xbf16>
    %24 = vector.shape_cast %23 : vector<16x16x4xbf16> to vector<256x4xbf16>
    %25 = tpu.concatenate %8, %10, %12, %14, %16, %18, %20, %22, %24 in 1 : vector<256x4xbf16>, vector<256x4xbf16>, vector<256x4xbf16>, vector<256x4xbf16>, vector<256x4xbf16>, vector<256x4xbf16>, vector<256x4xbf16>, vector<256x4xbf16>, vector<256x4xbf16> -> vector<256x36xbf16>
    %c0_4 = arith.constant 0 : index
    %c0_5 = arith.constant 0 : index
    %26 = vector.load %arg2[%c0_4, %c0_5] : memref<36x8xbf16, #tpu.memory_space<vmem>>, vector<36x8xbf16>
    %cst_6 = arith.constant dense<0.000000e+00> : vector<256x8xf32>
    %27 = tpu.matmul %25, %26, %cst_6 {dimension_numbers = #tpu.dot_dimension_numbers<[1], [0], [0], [1], [0, 0, 1, 1], [], []>} : vector<256x36xbf16>, vector<36x8xbf16>, vector<256x8xf32> -> vector<256x8xf32>
    %c0_7 = arith.constant 0 : index
    %c0_8 = arith.constant 0 : index
    %28 = vector.load %arg3[%c0_7, %c0_8] : memref<1x8xf32, #tpu.memory_space<vmem>>, vector<1x8xf32>
    %29 = vector.broadcast %28 : vector<1x8xf32> to vector<256x8xf32>
    %30 = arith.mulf %27, %29 : vector<256x8xf32>
    %c0_9 = arith.constant 0 : index
    %c0_10 = arith.constant 0 : index
    %31 = vector.load %arg4[%c0_9, %c0_10] : memref<1x8xf32, #tpu.memory_space<vmem>>, vector<1x8xf32>
    %32 = vector.broadcast %31 : vector<1x8xf32> to vector<256x8xf32>
    %33 = arith.addf %30, %32 : vector<256x8xf32>
    %cst_11 = arith.constant 0.000000e+00 : f32
    %34 = vector.broadcast %cst_11 : f32 to vector<256x8xf32>
    %35 = arith.maximumf %33, %34 : vector<256x8xf32>
    %36 = vector.shape_cast %35 : vector<256x8xf32> to vector<16x16x8xf32>
    %37 = arith.truncf %36 : vector<16x16x8xf32> to vector<16x16x8xbf16>
    %cst_12 = arith.constant 0.000000e+00 : bf16
    %38 = vector.broadcast %cst_12 : bf16 to vector<1x16x8xbf16>
    %39 = tpu.concatenate %38, %37, %38 in 0 : vector<1x16x8xbf16>, vector<16x16x8xbf16>, vector<1x16x8xbf16> -> vector<18x16x8xbf16>
    %cst_13 = arith.constant 0.000000e+00 : bf16
    %40 = vector.broadcast %cst_13 : bf16 to vector<18x1x8xbf16>
    %41 = tpu.concatenate %40, %39, %40 in 1 : vector<18x1x8xbf16>, vector<18x16x8xbf16>, vector<18x1x8xbf16> -> vector<18x18x8xbf16>
    %42 = vector.extract_strided_slice %41 {offsets = [0, 0, 0], sizes = [16, 16, 8], strides = [1, 1, 1]} : vector<18x18x8xbf16> to vector<16x16x8xbf16>
    %43 = vector.shape_cast %42 : vector<16x16x8xbf16> to vector<256x8xbf16>
    %44 = vector.extract_strided_slice %41 {offsets = [0, 1, 0], sizes = [16, 16, 8], strides = [1, 1, 1]} : vector<18x18x8xbf16> to vector<16x16x8xbf16>
    %45 = vector.shape_cast %44 : vector<16x16x8xbf16> to vector<256x8xbf16>
    %46 = vector.extract_strided_slice %41 {offsets = [0, 2, 0], sizes = [16, 16, 8], strides = [1, 1, 1]} : vector<18x18x8xbf16> to vector<16x16x8xbf16>
    %47 = vector.shape_cast %46 : vector<16x16x8xbf16> to vector<256x8xbf16>
    %48 = vector.extract_strided_slice %41 {offsets = [1, 0, 0], sizes = [16, 16, 8], strides = [1, 1, 1]} : vector<18x18x8xbf16> to vector<16x16x8xbf16>
    %49 = vector.shape_cast %48 : vector<16x16x8xbf16> to vector<256x8xbf16>
    %50 = vector.extract_strided_slice %41 {offsets = [1, 1, 0], sizes = [16, 16, 8], strides = [1, 1, 1]} : vector<18x18x8xbf16> to vector<16x16x8xbf16>
    %51 = vector.shape_cast %50 : vector<16x16x8xbf16> to vector<256x8xbf16>
    %52 = vector.extract_strided_slice %41 {offsets = [1, 2, 0], sizes = [16, 16, 8], strides = [1, 1, 1]} : vector<18x18x8xbf16> to vector<16x16x8xbf16>
    %53 = vector.shape_cast %52 : vector<16x16x8xbf16> to vector<256x8xbf16>
    %54 = vector.extract_strided_slice %41 {offsets = [2, 0, 0], sizes = [16, 16, 8], strides = [1, 1, 1]} : vector<18x18x8xbf16> to vector<16x16x8xbf16>
    %55 = vector.shape_cast %54 : vector<16x16x8xbf16> to vector<256x8xbf16>
    %56 = vector.extract_strided_slice %41 {offsets = [2, 1, 0], sizes = [16, 16, 8], strides = [1, 1, 1]} : vector<18x18x8xbf16> to vector<16x16x8xbf16>
    %57 = vector.shape_cast %56 : vector<16x16x8xbf16> to vector<256x8xbf16>
    %58 = vector.extract_strided_slice %41 {offsets = [2, 2, 0], sizes = [16, 16, 8], strides = [1, 1, 1]} : vector<18x18x8xbf16> to vector<16x16x8xbf16>
    %59 = vector.shape_cast %58 : vector<16x16x8xbf16> to vector<256x8xbf16>
    %60 = tpu.concatenate %43, %45, %47, %49, %51, %53, %55, %57, %59 in 1 : vector<256x8xbf16>, vector<256x8xbf16>, vector<256x8xbf16>, vector<256x8xbf16>, vector<256x8xbf16>, vector<256x8xbf16>, vector<256x8xbf16>, vector<256x8xbf16>, vector<256x8xbf16> -> vector<256x72xbf16>
    %c0_14 = arith.constant 0 : index
    %c0_15 = arith.constant 0 : index
    %61 = vector.load %arg5[%c0_14, %c0_15] : memref<72x8xbf16, #tpu.memory_space<vmem>>, vector<72x8xbf16>
    %cst_16 = arith.constant dense<0.000000e+00> : vector<256x8xf32>
    %62 = tpu.matmul %60, %61, %cst_16 {dimension_numbers = #tpu.dot_dimension_numbers<[1], [0], [0], [1], [0, 0, 1, 1], [], []>} : vector<256x72xbf16>, vector<72x8xbf16>, vector<256x8xf32> -> vector<256x8xf32>
    %c0_17 = arith.constant 0 : index
    %c0_18 = arith.constant 0 : index
    %63 = vector.load %arg6[%c0_17, %c0_18] : memref<1x8xf32, #tpu.memory_space<vmem>>, vector<1x8xf32>
    %64 = vector.broadcast %63 : vector<1x8xf32> to vector<256x8xf32>
    %65 = arith.mulf %62, %64 : vector<256x8xf32>
    %c0_19 = arith.constant 0 : index
    %c0_20 = arith.constant 0 : index
    %66 = vector.load %arg7[%c0_19, %c0_20] : memref<1x8xf32, #tpu.memory_space<vmem>>, vector<1x8xf32>
    %67 = vector.broadcast %66 : vector<1x8xf32> to vector<256x8xf32>
    %68 = arith.addf %65, %67 : vector<256x8xf32>
    %cst_21 = arith.constant 0.000000e+00 : f32
    %69 = vector.broadcast %cst_21 : f32 to vector<256x8xf32>
    %70 = arith.maximumf %68, %69 : vector<256x8xf32>
    %71 = vector.shape_cast %2 : vector<16x16x4xbf16> to vector<256x4xbf16>
    %c0_22 = arith.constant 0 : index
    %c0_23 = arith.constant 0 : index
    %72 = vector.load %arg8[%c0_22, %c0_23] : memref<4x8xbf16, #tpu.memory_space<vmem>>, vector<4x8xbf16>
    %cst_24 = arith.constant dense<0.000000e+00> : vector<256x8xf32>
    %73 = tpu.matmul %71, %72, %cst_24 {dimension_numbers = #tpu.dot_dimension_numbers<[1], [0], [0], [1], [0, 0, 1, 1], [], []>} : vector<256x4xbf16>, vector<4x8xbf16>, vector<256x8xf32> -> vector<256x8xf32>
    %c0_25 = arith.constant 0 : index
    %c0_26 = arith.constant 0 : index
    %74 = vector.load %arg9[%c0_25, %c0_26] : memref<1x8xf32, #tpu.memory_space<vmem>>, vector<1x8xf32>
    %75 = vector.broadcast %74 : vector<1x8xf32> to vector<256x8xf32>
    %76 = arith.addf %73, %75 : vector<256x8xf32>
    %77 = arith.addf %70, %76 : vector<256x8xf32>
    %78 = vector.shape_cast %77 : vector<256x8xf32> to vector<16x16x8xf32>
    %c0_27 = arith.constant 0 : index
    %c0_28 = arith.constant 0 : index
    %c0_29 = arith.constant 0 : index
    %c0_30 = arith.constant 0 : index
    %79 = vector.load %arg10[%c0_27, %c0_28, %c0_29, %c0_30] : memref<1x16x16x8xf32, #tpu.memory_space<vmem>>, vector<1x16x16x8xf32>
    %80 = vector.shape_cast %79 : vector<1x16x16x8xf32> to vector<16x16x8xf32>
    %81 = vector.shape_cast %78 : vector<16x16x8xf32> to vector<1x16x16x8xf32>
    tpu.vector_store %arg10[%c0_27, %c0_28, %c0_29, %c0_30], %81 {strides = array<i32>} : memref<1x16x16x8xf32, #tpu.memory_space<vmem>>, vector<1x16x16x8xf32>,
    return
  }
  func.func @transform_0(%arg0: i32) -> (i32, i32, i32, i32) {
    %c0_i32 = arith.constant 0 : i32
    %c0_i32_0 = arith.constant 0 : i32
    %c0_i32_1 = arith.constant 0 : i32
    %c0_i32_2 = arith.constant 0 : i32
    return %arg0, %c0_i32, %c0_i32_0, %c0_i32_1 : i32, i32, i32, i32
  }
  func.func @transform_1(%arg0: i32) -> (i32, i32) {
    %c0_i32 = arith.constant 0 : i32
    %c0_i32_0 = arith.constant 0 : i32
    %c0_i32_1 = arith.constant 0 : i32
    return %c0_i32, %c0_i32_0 : i32, i32
  }
  func.func @transform_2(%arg0: i32) -> (i32, i32) {
    %c0_i32 = arith.constant 0 : i32
    %c0_i32_0 = arith.constant 0 : i32
    %c0_i32_1 = arith.constant 0 : i32
    return %c0_i32, %c0_i32_0 : i32, i32
  }
  func.func @transform_3(%arg0: i32) -> (i32, i32) {
    %c0_i32 = arith.constant 0 : i32
    %c0_i32_0 = arith.constant 0 : i32
    %c0_i32_1 = arith.constant 0 : i32
    return %c0_i32, %c0_i32_0 : i32, i32
  }
  func.func @transform_4(%arg0: i32) -> (i32, i32) {
    %c0_i32 = arith.constant 0 : i32
    %c0_i32_0 = arith.constant 0 : i32
    %c0_i32_1 = arith.constant 0 : i32
    return %c0_i32, %c0_i32_0 : i32, i32
  }
  func.func @transform_5(%arg0: i32) -> (i32, i32) {
    %c0_i32 = arith.constant 0 : i32
    %c0_i32_0 = arith.constant 0 : i32
    %c0_i32_1 = arith.constant 0 : i32
    return %c0_i32, %c0_i32_0 : i32, i32
  }
  func.func @transform_6(%arg0: i32) -> (i32, i32) {
    %c0_i32 = arith.constant 0 : i32
    %c0_i32_0 = arith.constant 0 : i32
    %c0_i32_1 = arith.constant 0 : i32
    return %c0_i32, %c0_i32_0 : i32, i32
  }
  func.func @transform_7(%arg0: i32) -> (i32, i32) {
    %c0_i32 = arith.constant 0 : i32
    %c0_i32_0 = arith.constant 0 : i32
    %c0_i32_1 = arith.constant 0 : i32
    return %c0_i32, %c0_i32_0 : i32, i32
  }
  func.func @transform_8(%arg0: i32) -> (i32, i32) {
    %c0_i32 = arith.constant 0 : i32
    %c0_i32_0 = arith.constant 0 : i32
    %c0_i32_1 = arith.constant 0 : i32
    return %c0_i32, %c0_i32_0 : i32, i32
  }
  func.func @transform_9(%arg0: i32) -> (i32, i32, i32, i32) {
    %c0_i32 = arith.constant 0 : i32
    %c0_i32_0 = arith.constant 0 : i32
    %c0_i32_1 = arith.constant 0 : i32
    %c0_i32_2 = arith.constant 0 : i32
    return %arg0, %c0_i32, %c0_i32_0, %c0_i32_1 : i32, i32, i32, i32
  }
}

</mosaic_0001>

<llo_original>
// kernel: tpu_custom_call.1
$region0: #{tpu_custom_call.1}
  #allocation0 [shape = 'u32[]', space=smem, size = 0x4, offset = 0x4, fixed_abs, tag = 'smem constant byte address 0x4 - core index']
  #allocation1 [shape = 'u32[144,128]{1,0:T(1,128)}', space=vmem, size = 0x12000, scoped, tag = 'internal scratch']
  %s0 = inlined_call_operand.vmem [shape: f32[2,16,16,4], index: 0, kind: input, shape index: {}]
  %s1 = inlined_call_operand.vmem [shape: bf16[36,8], index: 1, kind: input, shape index: {}]
  %s2 = inlined_call_operand.vmem [shape: f32[1,8], index: 2, kind: input, shape index: {}]
  %s3 = inlined_call_operand.vmem [shape: f32[1,8], index: 3, kind: input, shape index: {}]
  %s4 = inlined_call_operand.vmem [shape: bf16[72,8], index: 4, kind: input, shape index: {}]
  %s5 = inlined_call_operand.vmem [shape: f32[1,8], index: 5, kind: input, shape index: {}]
  %s6 = inlined_call_operand.vmem [shape: f32[1,8], index: 6, kind: input, shape index: {}]
  %s7 = inlined_call_operand.vmem [shape: bf16[4,8], index: 7, kind: input, shape index: {}]
  %s8 = inlined_call_operand.vmem [shape: f32[1,8], index: 8, kind: input, shape index: {}]
  %s9 = inlined_call_operand.vmem [shape: f32[2,16,16,8], index: 9, kind: output, shape index: {}]
  %s10 = sld [smem:[#allocation0]]
  $region69: #{tpu_custom_call.1} parent=0
    _
  %s12 = ssub.s32 1, %s10
  %s13 = scalar_select 0, %s12, %s10
  loop: start=0, step=1, limit=4
  $region2: #{tpu_custom_call.1} parent=0 // loop_pre_header
    _
  $region3: #{tpu_custom_call.1} parent=0 // loop_header
    %s15 = sphi 0, %s19
    %p16 = scmp.ge.s32.totalorder %s15, 4
    %s25 = sphi 0, %s27
    %s28 = sphi 0, %s25
    %s29 = sphi 0, %s28
    %s45 = sphi 0, %s29
    %s49 = sphi 0, %s49
    %s51 = sphi 0, %s49
    %s52 = sphi 0, %s51
    %s66 = sphi 0, %s52
    %s70 = sphi 0, %s70
    %s72 = sphi 0, %s70
    %s73 = sphi 0, %s72
    %s87 = sphi 0, %s73
    %s91 = sphi 0, %s91
    %s93 = sphi 0, %s91
    %s94 = sphi 0, %s93
    %s108 = sphi 0, %s94
    %s112 = sphi 0, %s112
    %s114 = sphi 0, %s112
    %s115 = sphi 0, %s114
    %s129 = sphi 0, %s115
    %s133 = sphi 0, %s133
    %s135 = sphi 0, %s133
    %s136 = sphi 0, %s135
    %s150 = sphi 0, %s136
    %s154 = sphi 0, %s154
    %s156 = sphi 0, %s154
    %s157 = sphi 0, %s156
    %s171 = sphi 0, %s157
    %s175 = sphi 0, %s175
    %s177 = sphi 0, %s175
    %s178 = sphi 0, %s177
    %s192 = sphi 0, %s178
    %s196 = sphi 0, %s196
    %s198 = sphi 0, %s196
    %s199 = sphi 0, %s198
    %s213 = sphi 0, %s199
    %s219 = sphi 0, %s221
    %s222 = sphi 0, %s219
    %s223 = sphi 0, %s222
    %s239 = sphi 0, %s223
  $region4: #{tpu_custom_call.1} parent=0 // loop_header_branch
    %18 = sbr.rel (%p16) target = $region8
  $region5: #{tpu_custom_call.1} parent=0 // loop_body
    %s20 = ssub.s32 %s15, 1
    %s21 = ssub.s32 %s15, 2
    %s22 = sadd.s32 %s15, 1
    %s23 = ssub.s32 %s15, %s22
    %p24 = scmp.eq.s32.totalorder %s23, 0
    %s26 = sadd.s32 %s25, 1
    %s27 = scalar_select %p24, %s25, %s26
    %p30 = pneg %p24
    %p31 = scmp.eq.s32.totalorder %s15, 1
    %p32 = por %p30, %p31
    %p33 = scmp.ne.s32.totalorder %s25, %s28
    %p34 = scmp.eq.s32.totalorder %s15, 0
    %p35 = por %p33, %p34
    %p36 = scmp.ne.s32.totalorder %s25, %s28
    %p37 = scmp.eq.s32.totalorder %s20, 1
    %p38 = por %p36, %p37
    %p39 = scmp.ne.s32.totalorder %s28, %s29
    %p40 = scmp.eq.s32.totalorder %s20, 0
    %p41 = por %p39, %p40
    %p42 = scmp.ne.s32.totalorder %s28, %s29
    %p43 = scmp.eq.s32.totalorder %s21, 1
    %p44 = por %p42, %p43
    %p46 = scmp.ne.s32.totalorder %s29, %s45
    %p47 = scmp.eq.s32.totalorder %s21, 0
    %p48 = por %p46, %p47
    %s50 = sadd.s32 %s49, 1
    %p53 = scmp.eq.s32.totalorder %s15, 1
    %p54 = scmp.ne.s32.totalorder %s49, %s51
    %p55 = scmp.eq.s32.totalorder %s15, 0
    %p56 = por %p54, %p55
    %p57 = scmp.ne.s32.totalorder %s49, %s51
    %p58 = scmp.eq.s32.totalorder %s20, 1
    %p59 = por %p57, %p58
    %p60 = scmp.ne.s32.totalorder %s51, %s52
    %p61 = scmp.eq.s32.totalorder %s20, 0
    %p62 = por %p60, %p61
    %p63 = scmp.ne.s32.totalorder %s51, %s52
    %p64 = scmp.eq.s32.totalorder %s21, 1
    %p65 = por %p63, %p64
    %p67 = scmp.ne.s32.totalorder %s52, %s66
    %p68 = scmp.eq.s32.totalorder %s21, 0
    %p69 = por %p67, %p68
    %s71 = sadd.s32 %s70, 1
    %p74 = scmp.eq.s32.totalorder %s15, 1
    %p75 = scmp.ne.s32.totalorder %s70, %s72
    %p76 = scmp.eq.s32.totalorder %s15, 0
    %p77 = por %p75, %p76
    %p78 = scmp.ne.s32.totalorder %s70, %s72
    %p79 = scmp.eq.s32.totalorder %s20, 1
    %p80 = por %p78, %p79
    %p81 = scmp.ne.s32.totalorder %s72, %s73
    %p82 = scmp.eq.s32.totalorder %s20, 0
    %p83 = por %p81, %p82
    %p84 = scmp.ne.s32.totalorder %s72, %s73
    %p85 = scmp.eq.s32.totalorder %s21, 1
    %p86 = por %p84, %p85
    %p88 = scmp.ne.s32.totalorder %s73, %s87
    %p89 = scmp.eq.s32.totalorder %s21, 0
    %p90 = por %p88, %p89
    %s92 = sadd.s32 %s91, 1
    %p95 = scmp.eq.s32.totalorder %s15, 1
    %p96 = scmp.ne.s32.totalorder %s91, %s93
    %p97 = scmp.eq.s32.totalorder %s15, 0
    %p98 = por %p96, %p97
    %p99 = scmp.ne.s32.totalorder %s91, %s93
    %p100 = scmp.eq.s32.totalorder %s20, 1
    %p101 = por %p99, %p100
    %p102 = scmp.ne.s32.totalorder %s93, %s94
    %p103 = scmp.eq.s32.totalorder %s20, 0
    %p104 = por %p102, %p103
    %p105 = scmp.ne.s32.totalorder %s93, %s94
    %p106 = scmp.eq.s32.totalorder %s21, 1
    %p107 = por %p105, %p106
    %p109 = scmp.ne.s32.totalorder %s94, %s108
    %p110 = scmp.eq.s32.totalorder %s21, 0
    %p111 = por %p109, %p110
    %s113 = sadd.s32 %s112, 1
    %p116 = scmp.eq.s32.totalorder %s15, 1
    %p117 = scmp.ne.s32.totalorder %s112, %s114
    %p118 = scmp.eq.s32.totalorder %s15, 0
    %p119 = por %p117, %p118
    %p120 = scmp.ne.s32.totalorder %s112, %s114
    %p121 = scmp.eq.s32.totalorder %s20, 1
    %p122 = por %p120, %p121
    %p123 = scmp.ne.s32.totalorder %s114, %s115
    %p124 = scmp.eq.s32.totalorder %s20, 0
    %p125 = por %p123, %p124
    %p126 = scmp.ne.s32.totalorder %s114, %s115
    %p127 = scmp.eq.s32.totalorder %s21, 1
    %p128 = por %p126, %p127
    %p130 = scmp.ne.s32.totalorder %s115, %s129
    %p131 = scmp.eq.s32.totalorder %s21, 0
    %p132 = por %p130, %p131
    %s134 = sadd.s32 %s133, 1
    %p137 = scmp.eq.s32.totalorder %s15, 1
    %p138 = scmp.ne.s32.totalorder %s133, %s135
    %p139 = scmp.eq.s32.totalorder %s15, 0
    %p140 = por %p138, %p139
    %p141 = scmp.ne.s32.totalorder %s133, %s135
    %p142 = scmp.eq.s32.totalorder %s20, 1
    %p143 = por %p141, %p142
    %p144 = scmp.ne.s32.totalorder %s135, %s136
    %p145 = scmp.eq.s32.totalorder %s20, 0
    %p146 = por %p144, %p145
    %p147 = scmp.ne.s32.totalorder %s135, %s136
    %p148 = scmp.eq.s32.totalorder %s21, 1
    %p149 = por %p147, %p148
    %p151 = scmp.ne.s32.totalorder %s136, %s150
    %p152 = scmp.eq.s32.totalorder %s21, 0
    %p153 = por %p151, %p152
    %s155 = sadd.s32 %s154, 1
    %p158 = scmp.eq.s32.totalorder %s15, 1
    %p159 = scmp.ne.s32.totalorder %s154, %s156
    %p160 = scmp.eq.s32.totalorder %s15, 0
    %p161 = por %p159, %p160
    %p162 = scmp.ne.s32.totalorder %s154, %s156
    %p163 = scmp.eq.s32.totalorder %s20, 1
    %p164 = por %p162, %p163
    %p165 = scmp.ne.s32.totalorder %s156, %s157
    %p166 = scmp.eq.s32.totalorder %s20, 0
    %p167 = por %p165, %p166
    %p168 = scmp.ne.s32.totalorder %s156, %s157
    %p169 = scmp.eq.s32.totalorder %s21, 1
    %p170 = por %p168, %p169
    %p172 = scmp.ne.s32.totalorder %s157, %s171
    %p173 = scmp.eq.s32.totalorder %s21, 0
    %p174 = por %p172, %p173
    %s176 = sadd.s32 %s175, 1
    %p179 = scmp.eq.s32.totalorder %s15, 1
    %p180 = scmp.ne.s32.totalorder %s175, %s177
    %p181 = scmp.eq.s32.totalorder %s15, 0
    %p182 = por %p180, %p181
    %p183 = scmp.ne.s32.totalorder %s175, %s177
    %p184 = scmp.eq.s32.totalorder %s20, 1
    %p185 = por %p183, %p184
    %p186 = scmp.ne.s32.totalorder %s177, %s178
    %p187 = scmp.eq.s32.totalorder %s20, 0
    %p188 = por %p186, %p187
    %p189 = scmp.ne.s32.totalorder %s177, %s178
    %p190 = scmp.eq.s32.totalorder %s21, 1
    %p191 = por %p189, %p190
    %p193 = scmp.ne.s32.totalorder %s178, %s192
    %p194 = scmp.eq.s32.totalorder %s21, 0
    %p195 = por %p193, %p194
    %s197 = sadd.s32 %s196, 1
    %p200 = scmp.eq.s32.totalorder %s15, 1
    %p201 = scmp.ne.s32.totalorder %s196, %s198
    %p202 = scmp.eq.s32.totalorder %s15, 0
    %p203 = por %p201, %p202
    %p204 = scmp.ne.s32.totalorder %s196, %s198
    %p205 = scmp.eq.s32.totalorder %s20, 1
    %p206 = por %p204, %p205
    %p207 = scmp.ne.s32.totalorder %s198, %s199
    %p208 = scmp.eq.s32.totalorder %s20, 0
    %p209 = por %p207, %p208
    %p210 = scmp.ne.s32.totalorder %s198, %s199
    %p211 = scmp.eq.s32.totalorder %s21, 1
    %p212 = por %p210, %p211
    %p214 = scmp.ne.s32.totalorder %s199, %s213
    %p215 = scmp.eq.s32.totalorder %s21, 0
    %p216 = por %p214, %p215
    %s217 = ssub.s32 %s15, %s22
    %p218 = scmp.eq.s32.totalorder %s217, 0
    %s220 = sadd.s32 %s219, 1
    %s221 = scalar_select %p218, %s219, %s220
    %p224 = pneg %p218
    %p225 = scmp.eq.s32.totalorder %s15, 1
    %p226 = por %p224, %p225
    %p227 = scmp.ne.s32.totalorder %s219, %s222
    %p228 = scmp.eq.s32.totalorder %s15, 0
    %p229 = por %p227, %p228
    %p230 = scmp.ne.s32.totalorder %s219, %s222
    %p231 = scmp.eq.s32.totalorder %s20, 1
    %p232 = por %p230, %p231
    %p233 = scmp.ne.s32.totalorder %s222, %s223
    %p234 = scmp.eq.s32.totalorder %s20, 0
    %p235 = por %p233, %p234
    %p236 = scmp.ne.s32.totalorder %s222, %s223
    %p237 = scmp.eq.s32.totalorder %s21, 1
    %p238 = por %p236, %p237
    %p240 = scmp.ne.s32.totalorder %s223, %s239
    %p241 = scmp.eq.s32.totalorder %s21, 0
    %p242 = por %p240, %p241
    %p243 = scmp.le.s32.totalorder 1, %s15
    %p244 = scmp.lt.s32.totalorder %s15, 3
    %p245 = pnand %p243, %p244
    %p246 = pneg %p245
    // Predicated region
    $region9: #{tpu_custom_call.1} parent=5 // pred_check
      _
    $region10: #{tpu_custom_call.1} parent=5 // pred_check_branch
      %248 = sbr.rel (%p245) target = $region12
    $region11: #{tpu_custom_call.1} parent=5 // pred_region
      %s249 = ssub.s32 %s15, 1
      // Predicated region
      $region13: #{tpu_custom_call.1} parent=11 // pred_check
        %p250 = pneg %p62
      $region14: #{tpu_custom_call.1} parent=11 // pred_check_branch
        %252 = sbr.rel (%p250) target = $region16
      $region15: #{tpu_custom_call.1} parent=11 // pred_region
        _
      $region16: #{tpu_custom_call.1} parent=11 // pred_fallthru
        _
      // Predicated region
      $region17: #{tpu_custom_call.1} parent=11 // pred_check
        %p253 = pneg %p83
      $region18: #{tpu_custom_call.1} parent=11 // pred_check_branch
        %255 = sbr.rel (%p253) target = $region20
      $region19: #{tpu_custom_call.1} parent=11 // pred_region
        _
      $region20: #{tpu_custom_call.1} parent=11 // pred_fallthru
        _
      // Predicated region
      $region21: #{tpu_custom_call.1} parent=11 // pred_check
        %p256 = pneg %p104
      $region22: #{tpu_custom_call.1} parent=11 // pred_check_branch
        %258 = sbr.rel (%p256) target = $region24
      $region23: #{tpu_custom_call.1} parent=11 // pred_region
        _
      $region24: #{tpu_custom_call.1} parent=11 // pred_fallthru
        _
      // Predicated region
      $region25: #{tpu_custom_call.1} parent=11 // pred_check
        %p259 = pneg %p125
      $region26: #{tpu_custom_call.1} parent=11 // pred_check_branch
        %261 = sbr.rel (%p259) target = $region28
      $region27: #{tpu_custom_call.1} parent=11 // pred_region
        _
      $region28: #{tpu_custom_call.1} parent=11 // pred_fallthru
        _
      // Predicated region
      $region29: #{tpu_custom_call.1} parent=11 // pred_check
        %p262 = pneg %p146
      $region30: #{tpu_custom_call.1} parent=11 // pred_check_branch
        %264 = sbr.rel (%p262) target = $region32
      $region31: #{tpu_custom_call.1} parent=11 // pred_region
        _
      $region32: #{tpu_custom_call.1} parent=11 // pred_fallthru
        _
      // Predicated region
      $region33: #{tpu_custom_call.1} parent=11 // pred_check
        %p265 = pneg %p167
      $region34: #{tpu_custom_call.1} parent=11 // pred_check_branch
        %267 = sbr.rel (%p265) target = $region36
      $region35: #{tpu_custom_call.1} parent=11 // pred_region
        _
      $region36: #{tpu_custom_call.1} parent=11 // pred_fallthru
        _
      // Predicated region
      $region37: #{tpu_custom_call.1} parent=11 // pred_check
        %p268 = pneg %p188
      $region38: #{tpu_custom_call.1} parent=11 // pred_check_branch
        %270 = sbr.rel (%p268) target = $region40
      $region39: #{tpu_custom_call.1} parent=11 // pred_region
        _
      $region40: #{tpu_custom_call.1} parent=11 // pred_fallthru
        _
      // Predicated region
      $region41: #{tpu_custom_call.1} parent=11 // pred_check
        %p271 = pneg %p209
      $region42: #{tpu_custom_call.1} parent=11 // pred_check_branch
        %273 = sbr.rel (%p271) target = $region44
      $region43: #{tpu_custom_call.1} parent=11 // pred_region
        _
      $region44: #{tpu_custom_call.1} parent=11 // pred_fallthru
        _
    $region12: #{tpu_custom_call.1} parent=5 // pred_fallthru
      _
    %p274 = scmp.lt.s32.totalorder %s15, 2
    // Predicated region
    $region45: #{tpu_custom_call.1} parent=5 // pred_check
      %p275 = pneg %p274
    $region46: #{tpu_custom_call.1} parent=5 // pred_check_branch
      %277 = sbr.rel (%p275) target = $region48
    $region47: #{tpu_custom_call.1} parent=5 // pred_region
      // Predicated region
      $region49: #{tpu_custom_call.1} parent=47 // pred_check
        %p278 = pneg %p35
      $region50: #{tpu_custom_call.1} parent=47 // pred_check_branch
        %280 = sbr.rel (%p278) target = $region52
      $region51: #{tpu_custom_call.1} parent=47 // pred_region
        %p281 = scmp.lt.s32.totalorder %s15, 1
        %s282 = scalar_select %p281, %s15, 1
        %s283 = smul.addr %s282, 32
        %s284 = smul.addr %s283, 8
        %s285 = scalar_lea.vmem %s0, %s284
      $region52: #{tpu_custom_call.1} parent=47 // pred_fallthru
        _
    $region48: #{tpu_custom_call.1} parent=5 // pred_fallthru
      _
    %p286 = scmp.le.s32.totalorder 1, %s15
    %p287 = scmp.lt.s32.totalorder %s15, 3
    %p288 = pnand %p286, %p287
    %p289 = pneg %p288
    // Predicated region
    $region53: #{tpu_custom_call.1} parent=5 // pred_check
      _
    $region54: #{tpu_custom_call.1} parent=5 // pred_check_branch
      %291 = sbr.rel (%p288) target = $region56
    $region55: #{tpu_custom_call.1} parent=5 // pred_region
      %s292 = ssub.s32 %s15, 1
      %p293 = scmp.lt.s32.totalorder %s20, 1
      %s294 = scalar_select %p293, %s20, 1
      %s295 = smul.addr %s294, 32
      %s296 = smul.addr %s295, 8
      %s297 = scalar_lea.vmem %s0, %s296
      %p298 = pneg %p41
      %p299 = pneg %p38
      %p300 = pneg %p62
      %p301 = pneg %p59
      %p302 = pneg %p83
      %p303 = pneg %p80
      %p304 = pneg %p104
      %p305 = pneg %p101
      %p306 = pneg %p125
      %p307 = pneg %p122
      %p308 = pneg %p146
      %p309 = pneg %p143
      %p310 = pneg %p167
      %p311 = pneg %p164
      %p312 = pneg %p188
      %p313 = pneg %p185
      %p314 = pneg %p209
      %p315 = pneg %p206
      %p316 = pneg %p235
      %p317 = pneg %p232
      %p318 = scmp.lt.s32.totalorder %s20, 1
      %s319 = scalar_select %p318, %s20, 1
      %s320 = smul.addr %s319, 32
      %s321 = smul.addr %s320, 8
      %s322 = scalar_lea.vmem %s9, %s321
      %p323 = scmp.lt.s32.totalorder %s20, 1
      %s324 = scalar_select %p323, %s20, 1
      %s325 = smul.addr %s324, 32
      %s326 = smul.addr %s325, 8
      %s327 = scalar_lea.vmem %s0, %s326
      %p328 = scmp.lt.s32.totalorder %s20, 1
      %s329 = scalar_select %p328, %s20, 1
      %s330 = smul.addr %s329, 32
      %s331 = smul.addr %s330, 8
      %s332 = scalar_lea.vmem %s9, %s331
      %v334 = vld [vmem:[%s327] sm:$0xff]
      %v335 = vld [vmem:[%s327 + $0x8] sm:$0xff]
      %v336 = vld [vmem:[%s327 + $0x10] sm:$0xff]
      %v337 = vld [vmem:[%s327 + $0x18] sm:$0xff]
      %v338 = vld [vmem:[%s327 + $0x20] sm:$0xff]
      %v339 = vld [vmem:[%s327 + $0x28] sm:$0xff]
      %v340 = vld [vmem:[%s327 + $0x30] sm:$0xff]
      %v341 = vld [vmem:[%s327 + $0x38] sm:$0xff]
      %v342 = vld [vmem:[%s327 + $0x40] sm:$0xff]
      %v343 = vld [vmem:[%s327 + $0x48] sm:$0xff]
      %v344 = vld [vmem:[%s327 + $0x50] sm:$0xff]
      %v345 = vld [vmem:[%s327 + $0x58] sm:$0xff]
      %v346 = vld [vmem:[%s327 + $0x60] sm:$0xff]
      %v347 = vld [vmem:[%s327 + $0x68] sm:$0xff]
      %v348 = vld [vmem:[%s327 + $0x70] sm:$0xff]
      %v349 = vld [vmem:[%s327 + $0x78] sm:$0xff]
      %v350 = vld [vmem:[%s327 + $0x80] sm:$0xff]
      %v351 = vld [vmem:[%s327 + $0x88] sm:$0xff]
      %v352 = vld [vmem:[%s327 + $0x90] sm:$0xff]
      %v353 = vld [vmem:[%s327 + $0x98] sm:$0xff]
      %v354 = vld [vmem:[%s327 + $0xa0] sm:$0xff]
      %v355 = vld [vmem:[%s327 + $0xa8] sm:$0xff]
      %v356 = vld [vmem:[%s327 + $0xb0] sm:$0xff]
      %v357 = vld [vmem:[%s327 + $0xb8] sm:$0xff]
      %v358 = vld [vmem:[%s327 + $0xc0] sm:$0xff]
      %v359 = vld [vmem:[%s327 + $0xc8] sm:$0xff]
      %v360 = vld [vmem:[%s327 + $0xd0] sm:$0xff]
      %v361 = vld [vmem:[%s327 + $0xd8] sm:$0xff]
      %v362 = vld [vmem:[%s327 + $0xe0] sm:$0xff]
      %v363 = vld [vmem:[%s327 + $0xe8] sm:$0xff]
      %v364 = vld [vmem:[%s327 + $0xf0] sm:$0xff]
      %v365 = vld [vmem:[%s327 + $0xf8] sm:$0xff]
      %v366 = vpack.c.bf16 %v335, %v334
      %v367 = vpack.c.bf16 %v337, %v336
      %v368 = vpack.c.bf16 %v339, %v338
      %v369 = vpack.c.bf16 %v341, %v340
      %v370 = vpack.c.bf16 %v343, %v342
      %v371 = vpack.c.bf16 %v345, %v344
      %v372 = vpack.c.bf16 %v347, %v346
      %v373 = vpack.c.bf16 %v349, %v348
      %v374 = vpack.c.bf16 %v351, %v350
      %v375 = vpack.c.bf16 %v353, %v352
      %v376 = vpack.c.bf16 %v355, %v354
      %v377 = vpack.c.bf16 %v357, %v356
      %v378 = vpack.c.bf16 %v359, %v358
      %v379 = vpack.c.bf16 %v361, %v360
      %v380 = vpack.c.bf16 %v363, %v362
      %v381 = vpack.c.bf16 %v365, %v364
      %v383 = vshrl.u32 0, 16
      %v385 = vrot.slane %v383, 7
      %v386 = vshll.u32 0, 16
      %v388 = vor.u32 %v385, %v386
      %v390 = vshrl.u32 %v366, 16
      %v392 = vrot.slane %v390, 7
      %v393 = vshll.u32 %v366, 16
      %v395 = vor.u32 %v392, %v393
      %v397 = vshrl.u32 %v367, 16
      %v399 = vrot.slane %v397, 7
      %v400 = vshll.u32 %v367, 16
      %v402 = vor.u32 %v399, %v400
      %v404 = vshrl.u32 %v368, 16
      %v406 = vrot.slane %v404, 7
      %v407 = vshll.u32 %v368, 16
      %v409 = vor.u32 %v406, %v407
      %v411 = vshrl.u32 %v369, 16
      %v413 = vrot.slane %v411, 7
      %v414 = vshll.u32 %v369, 16
      %v416 = vor.u32 %v413, %v414
      %v418 = vshrl.u32 %v370, 16
      %v420 = vrot.slane %v418, 7
      %v421 = vshll.u32 %v370, 16
      %v423 = vor.u32 %v420, %v421
      %v425 = vshrl.u32 %v371, 16
      %v427 = vrot.slane %v425, 7
      %v428 = vshll.u32 %v371, 16
      %v430 = vor.u32 %v427, %v428
      %v432 = vshrl.u32 %v372, 16
      %v434 = vrot.slane %v432, 7
      %v435 = vshll.u32 %v372, 16
      %v437 = vor.u32 %v434, %v435
      %v439 = vshrl.u32 %v373, 16
      %v441 = vrot.slane %v439, 7
      %v442 = vshll.u32 %v373, 16
      %v444 = vor.u32 %v441, %v442
      %v446 = vshrl.u32 %v374, 16
      %v448 = vrot.slane %v446, 7
      %v449 = vshll.u32 %v374, 16
      %v451 = vor.u32 %v448, %v449
      %v453 = vshrl.u32 %v375, 16
      %v455 = vrot.slane %v453, 7
      %v456 = vshll.u32 %v375, 16
      %v458 = vor.u32 %v455, %v456
      %v460 = vshrl.u32 %v376, 16
      %v462 = vrot.slane %v460, 7
      %v463 = vshll.u32 %v376, 16
      %v465 = vor.u32 %v462, %v463
      %v467 = vshrl.u32 %v377, 16
      %v469 = vrot.slane %v467, 7
      %v470 = vshll.u32 %v377, 16
      %v472 = vor.u32 %v469, %v470
      %v474 = vshrl.u32 %v378, 16
      %v476 = vrot.slane %v474, 7
      %v477 = vshll.u32 %v378, 16
      %v479 = vor.u32 %v476, %v477
      %v481 = vshrl.u32 %v379, 16
      %v483 = vrot.slane %v481, 7
      %v484 = vshll.u32 %v379, 16
      %v486 = vor.u32 %v483, %v484
      %v488 = vshrl.u32 %v380, 16
      %v490 = vrot.slane %v488, 7
      %v491 = vshll.u32 %v380, 16
      %v493 = vor.u32 %v490, %v491
      %v495 = vshrl.u32 %v381, 16
      %v497 = vrot.slane %v495, 7
      %v498 = vshll.u32 %v381, 16
      %v500 = vor.u32 %v497, %v498
      %vm535 = vcmask 1040384
      %vm536 = vsmask.f32 256
      %vm537 = vmand %vm535, %vm536
      %v538 = vsel %vm537, 0, %v388
      %v539 = vsel %vm537, 0, %v395
      %v540 = vsel %vm537, 0, %v402
      %v541 = vsel %vm537, 0, %v409
      %v542 = vsel %vm537, 0, %v416
      %v543 = vsel %vm537, 0, %v423
      %v544 = vsel %vm537, 0, %v430
      %v545 = vsel %vm537, 0, %v437
      %v546 = vsel %vm537, 0, %v444
      %v547 = vsel %vm537, 0, %v451
      %v548 = vsel %vm537, 0, %v458
      %v549 = vsel %vm537, 0, %v465
      %v550 = vsel %vm537, 0, %v472
      %v551 = vsel %vm537, 0, %v479
      %v552 = vsel %vm537, 0, %v486
      %v553 = vsel %vm537, 0, %v493
      %v554 = vsel %vm537, 0, %v500
      %v555 = vsel %vm537, %v385, 0
      %v556 = vsel %vm537, %v392, 0
      %v557 = vsel %vm537, %v399, 0
      %v558 = vsel %vm537, %v406, 0
      %v559 = vsel %vm537, %v413, 0
      %v560 = vsel %vm537, %v420, 0
      %v561 = vsel %vm537, %v427, 0
      %v562 = vsel %vm537, %v434, 0
      %v563 = vsel %vm537, %v441, 0
      %v564 = vsel %vm537, %v448, 0
      %v565 = vsel %vm537, %v455, 0
      %v566 = vsel %vm537, %v462, 0
      %v567 = vsel %vm537, %v469, 0
      %v568 = vsel %vm537, %v476, 0
      %v569 = vsel %vm537, %v483, 0
      %v570 = vsel %vm537, %v490, 0
      %v571 = vsel %vm537, %v497, 0
      %vm572 = vsmask.f32 7424
      %v574 = vshrl.u32 %v538, 16
      %v576 = vshll.u32 %v538, 16
      %v578 = vrot.slane %v576, 1
      %v579 = vor.u32 %v574, %v578
      %v581 = vshll.u32 %v555, 16
      %v583 = vrot.slane %v581, 1
      %v584 = vsel %vm572, %v579, %v583
      %v586 = vshrl.u32 %v539, 16
      %v588 = vshll.u32 %v539, 16
      %v590 = vrot.slane %v588, 1
      %v591 = vor.u32 %v586, %v590
      %v593 = vshll.u32 %v556, 16
      %v595 = vrot.slane %v593, 1
      %v596 = vsel %vm572, %v591, %v595
      %v598 = vshrl.u32 %v540, 16
      %v600 = vshll.u32 %v540, 16
      %v602 = vrot.slane %v600, 1
      %v603 = vor.u32 %v598, %v602
      %v605 = vshll.u32 %v557, 16
      %v607 = vrot.slane %v605, 1
      %v608 = vsel %vm572, %v603, %v607
      %v610 = vshrl.u32 %v541, 16
      %v612 = vshll.u32 %v541, 16
      %v614 = vrot.slane %v612, 1
      %v615 = vor.u32 %v610, %v614
      %v617 = vshll.u32 %v558, 16
      %v619 = vrot.slane %v617, 1
      %v620 = vsel %vm572, %v615, %v619
      %v622 = vshrl.u32 %v542, 16
      %v624 = vshll.u32 %v542, 16
      %v626 = vrot.slane %v624, 1
      %v627 = vor.u32 %v622, %v626
      %v629 = vshll.u32 %v559, 16
      %v631 = vrot.slane %v629, 1
      %v632 = vsel %vm572, %v627, %v631
      %v634 = vshrl.u32 %v543, 16
      %v636 = vshll.u32 %v543, 16
      %v638 = vrot.slane %v636, 1
      %v639 = vor.u32 %v634, %v638
      %v641 = vshll.u32 %v560, 16
      %v643 = vrot.slane %v641, 1
      %v644 = vsel %vm572, %v639, %v643
      %v646 = vshrl.u32 %v544, 16
      %v648 = vshll.u32 %v544, 16
      %v650 = vrot.slane %v648, 1
      %v651 = vor.u32 %v646, %v650
      %v653 = vshll.u32 %v561, 16
      %v655 = vrot.slane %v653, 1
      %v656 = vsel %vm572, %v651, %v655
      %v658 = vshrl.u32 %v545, 16
      %v660 = vshll.u32 %v545, 16
      %v662 = vrot.slane %v660, 1
      %v663 = vor.u32 %v658, %v662
      %v665 = vshll.u32 %v562, 16
      %v667 = vrot.slane %v665, 1
      %v668 = vsel %vm572, %v663, %v667
      %v670 = vshrl.u32 %v546, 16
      %v672 = vshll.u32 %v546, 16
      %v674 = vrot.slane %v672, 1
      %v675 = vor.u32 %v670, %v674
      %v677 = vshll.u32 %v563, 16
      %v679 = vrot.slane %v677, 1
      %v680 = vsel %vm572, %v675, %v679
      %v682 = vshrl.u32 %v547, 16
      %v684 = vshll.u32 %v547, 16
      %v686 = vrot.slane %v684, 1
      %v687 = vor.u32 %v682, %v686
      %v689 = vshll.u32 %v564, 16
      %v691 = vrot.slane %v689, 1
      %v692 = vsel %vm572, %v687, %v691
      %v694 = vshrl.u32 %v548, 16
      %v696 = vshll.u32 %v548, 16
      %v698 = vrot.slane %v696, 1
      %v699 = vor.u32 %v694, %v698
      %v701 = vshll.u32 %v565, 16
      %v703 = vrot.slane %v701, 1
      %v704 = vsel %vm572, %v699, %v703
      %v706 = vshrl.u32 %v549, 16
      %v708 = vshll.u32 %v549, 16
      %v710 = vrot.slane %v708, 1
      %v711 = vor.u32 %v706, %v710
      %v713 = vshll.u32 %v566, 16
      %v715 = vrot.slane %v713, 1
      %v716 = vsel %vm572, %v711, %v715
      %v718 = vshrl.u32 %v550, 16
      %v720 = vshll.u32 %v550, 16
      %v722 = vrot.slane %v720, 1
      %v723 = vor.u32 %v718, %v722
      %v725 = vshll.u32 %v567, 16
      %v727 = vrot.slane %v725, 1
      %v728 = vsel %vm572, %v723, %v727
      %v730 = vshrl.u32 %v551, 16
      %v732 = vshll.u32 %v551, 16
      %v734 = vrot.slane %v732, 1
      %v735 = vor.u32 %v730, %v734
      %v737 = vshll.u32 %v568, 16
      %v739 = vrot.slane %v737, 1
      %v740 = vsel %vm572, %v735, %v739
      %v742 = vshrl.u32 %v552, 16
      %v744 = vshll.u32 %v552, 16
      %v746 = vrot.slane %v744, 1
      %v747 = vor.u32 %v742, %v746
      %v749 = vshll.u32 %v569, 16
      %v751 = vrot.slane %v749, 1
      %v752 = vsel %vm572, %v747, %v751
      %v754 = vshrl.u32 %v553, 16
      %v756 = vshll.u32 %v553, 16
      %v758 = vrot.slane %v756, 1
      %v759 = vor.u32 %v754, %v758
      %v761 = vshll.u32 %v570, 16
      %v763 = vrot.slane %v761, 1
      %v764 = vsel %vm572, %v759, %v763
      %vm797 = vcmask 1046528
      %v798 = vrot.slane %v538, 1
      %v799 = vrot.slane %v555, 1
      %v800 = vsel %vm797, %v798, %v799
      %v801 = vrot.slane %v539, 1
      %v802 = vrot.slane %v556, 1
      %v803 = vsel %vm797, %v801, %v802
      %v804 = vrot.slane %v540, 1
      %v805 = vrot.slane %v557, 1
      %v806 = vsel %vm797, %v804, %v805
      %v807 = vrot.slane %v541, 1
      %v808 = vrot.slane %v558, 1
      %v809 = vsel %vm797, %v807, %v808
      %v810 = vrot.slane %v542, 1
      %v811 = vrot.slane %v559, 1
      %v812 = vsel %vm797, %v810, %v811
      %v813 = vrot.slane %v543, 1
      %v814 = vrot.slane %v560, 1
      %v815 = vsel %vm797, %v813, %v814
      %v816 = vrot.slane %v544, 1
      %v817 = vrot.slane %v561, 1
      %v818 = vsel %vm797, %v816, %v817
      %v819 = vrot.slane %v545, 1
      %v820 = vrot.slane %v562, 1
      %v821 = vsel %vm797, %v819, %v820
      %v822 = vrot.slane %v546, 1
      %v823 = vrot.slane %v563, 1
      %v824 = vsel %vm797, %v822, %v823
      %v825 = vrot.slane %v547, 1
      %v826 = vrot.slane %v564, 1
      %v827 = vsel %vm797, %v825, %v826
      %v828 = vrot.slane %v548, 1
      %v829 = vrot.slane %v565, 1
      %v830 = vsel %vm797, %v828, %v829
      %v831 = vrot.slane %v549, 1
      %v832 = vrot.slane %v566, 1
      %v833 = vsel %vm797, %v831, %v832
      %v834 = vrot.slane %v550, 1
      %v835 = vrot.slane %v567, 1
      %v836 = vsel %vm797, %v834, %v835
      %v837 = vrot.slane %v551, 1
      %v838 = vrot.slane %v568, 1
      %v839 = vsel %vm797, %v837, %v838
      %v840 = vrot.slane %v552, 1
      %v841 = vrot.slane %v569, 1
      %v842 = vsel %vm797, %v840, %v841
      %v843 = vrot.slane %v553, 1
      %v844 = vrot.slane %v570, 1
      %v845 = vsel %vm797, %v843, %v844
      %v847 = vshrl.u32 %v554, 16
      %v849 = vshll.u32 %v554, 16
      %v851 = vrot.slane %v849, 1
      %v852 = vor.u32 %v847, %v851
      %v854 = vshll.u32 %v571, 16
      %v856 = vrot.slane %v854, 1
      %v857 = vsel %vm572, %v852, %v856
      %v860 = vrot.slane %v554, 1
      %v861 = vrot.slane %v571, 1
      %v862 = vsel %vm797, %v860, %v861
      %863 = vrot.lane.b32.xlu0 %v584, 4
      %v864 = vpop.permute.xlu0 %863
      %865 = vrot.lane.b32.xlu0 %v596, 4
      %v866 = vpop.permute.xlu0 %865
      %867 = vrot.lane.b32.xlu0 %v608, 4
      %v868 = vpop.permute.xlu0 %867
      %869 = vrot.lane.b32.xlu0 %v620, 4
      %v870 = vpop.permute.xlu0 %869
      %871 = vrot.lane.b32.xlu0 %v632, 4
      %v872 = vpop.permute.xlu0 %871
      %873 = vrot.lane.b32.xlu0 %v644, 4
      %v874 = vpop.permute.xlu0 %873
      %875 = vrot.lane.b32.xlu0 %v656, 4
      %v876 = vpop.permute.xlu0 %875
      %877 = vrot.lane.b32.xlu0 %v668, 4
      %v878 = vpop.permute.xlu0 %877
      %879 = vrot.lane.b32.xlu0 %v680, 4
      %v880 = vpop.permute.xlu0 %879
      %881 = vrot.lane.b32.xlu0 %v692, 4
      %v882 = vpop.permute.xlu0 %881
      %883 = vrot.lane.b32.xlu0 %v704, 4
      %v884 = vpop.permute.xlu0 %883
      %885 = vrot.lane.b32.xlu0 %v716, 4
      %v886 = vpop.permute.xlu0 %885
      %887 = vrot.lane.b32.xlu0 %v728, 4
      %v888 = vpop.permute.xlu0 %887
      %889 = vrot.lane.b32.xlu0 %v740, 4
      %v890 = vpop.permute.xlu0 %889
      %891 = vrot.lane.b32.xlu0 %v752, 4
      %v892 = vpop.permute.xlu0 %891
      %893 = vrot.lane.b32.xlu0 %v764, 4
      %v894 = vpop.permute.xlu0 %893
      %895 = vrot.lane.b32.xlu0 %v800, 8
      %v896 = vpop.permute.xlu0 %895
      %897 = vrot.lane.b32.xlu0 %v803, 8
      %v898 = vpop.permute.xlu0 %897
      %899 = vrot.lane.b32.xlu0 %v806, 8
      %v900 = vpop.permute.xlu0 %899
      %901 = vrot.lane.b32.xlu0 %v809, 8
      %v902 = vpop.permute.xlu0 %901
      %903 = vrot.lane.b32.xlu0 %v812, 8
      %v904 = vpop.permute.xlu0 %903
      %905 = vrot.lane.b32.xlu0 %v815, 8
      %v906 = vpop.permute.xlu0 %905
      %907 = vrot.lane.b32.xlu0 %v818, 8
      %v908 = vpop.permute.xlu0 %907
      %909 = vrot.lane.b32.xlu0 %v821, 8
      %v910 = vpop.permute.xlu0 %909
      %911 = vrot.lane.b32.xlu0 %v824, 8
      %v912 = vpop.permute.xlu0 %911
      %913 = vrot.lane.b32.xlu0 %v827, 8
      %v914 = vpop.permute.xlu0 %913
      %915 = vrot.lane.b32.xlu0 %v830, 8
      %v916 = vpop.permute.xlu0 %915
      %917 = vrot.lane.b32.xlu0 %v833, 8
      %v918 = vpop.permute.xlu0 %917
      %919 = vrot.lane.b32.xlu0 %v836, 8
      %v920 = vpop.permute.xlu0 %919
      %921 = vrot.lane.b32.xlu0 %v839, 8
      %v922 = vpop.permute.xlu0 %921
      %923 = vrot.lane.b32.xlu0 %v842, 8
      %v924 = vpop.permute.xlu0 %923
      %925 = vrot.lane.b32.xlu0 %v845, 8
      %v926 = vpop.permute.xlu0 %925
      %927 = vrot.lane.b32.xlu0 %v539, 12
      %v928 = vpop.permute.xlu0 %927
      %929 = vrot.lane.b32.xlu0 %v540, 12
      %v930 = vpop.permute.xlu0 %929
      %931 = vrot.lane.b32.xlu0 %v541, 12
      %v932 = vpop.permute.xlu0 %931
      %933 = vrot.lane.b32.xlu0 %v542, 12
      %v934 = vpop.permute.xlu0 %933
      %935 = vrot.lane.b32.xlu0 %v543, 12
      %v936 = vpop.permute.xlu0 %935
      %937 = vrot.lane.b32.xlu0 %v544, 12
      %v938 = vpop.permute.xlu0 %937
      %939 = vrot.lane.b32.xlu0 %v545, 12
      %v940 = vpop.permute.xlu0 %939
      %941 = vrot.lane.b32.xlu0 %v546, 12
      %v942 = vpop.permute.xlu0 %941
      %943 = vrot.lane.b32.xlu0 %v547, 12
      %v944 = vpop.permute.xlu0 %943
      %945 = vrot.lane.b32.xlu0 %v548, 12
      %v946 = vpop.permute.xlu0 %945
      %947 = vrot.lane.b32.xlu0 %v549, 12
      %v948 = vpop.permute.xlu0 %947
      %949 = vrot.lane.b32.xlu0 %v550, 12
      %v950 = vpop.permute.xlu0 %949
      %951 = vrot.lane.b32.xlu0 %v551, 12
      %v952 = vpop.permute.xlu0 %951
      %953 = vrot.lane.b32.xlu0 %v552, 12
      %v954 = vpop.permute.xlu0 %953
      %955 = vrot.lane.b32.xlu0 %v553, 12
      %v956 = vpop.permute.xlu0 %955
      %957 = vrot.lane.b32.xlu0 %v554, 12
      %v958 = vpop.permute.xlu0 %957
      %959 = vrot.lane.b32.xlu0 %v596, 16
      %v960 = vpop.permute.xlu0 %959
      %961 = vrot.lane.b32.xlu0 %v608, 16
      %v962 = vpop.permute.xlu0 %961
      %963 = vrot.lane.b32.xlu0 %v620, 16
      %v964 = vpop.permute.xlu0 %963
      %965 = vrot.lane.b32.xlu0 %v632, 16
      %v966 = vpop.permute.xlu0 %965
      %967 = vrot.lane.b32.xlu0 %v644, 16
      %v968 = vpop.permute.xlu0 %967
      %969 = vrot.lane.b32.xlu0 %v656, 16
      %v970 = vpop.permute.xlu0 %969
      %971 = vrot.lane.b32.xlu0 %v668, 16
      %v972 = vpop.permute.xlu0 %971
      %973 = vrot.lane.b32.xlu0 %v680, 16
      %v974 = vpop.permute.xlu0 %973
      %975 = vrot.lane.b32.xlu0 %v692, 16
      %v976 = vpop.permute.xlu0 %975
      %977 = vrot.lane.b32.xlu0 %v704, 16
      %v978 = vpop.permute.xlu0 %977
      %979 = vrot.lane.b32.xlu0 %v716, 16
      %v980 = vpop.permute.xlu0 %979
      %981 = vrot.lane.b32.xlu0 %v728, 16
      %v982 = vpop.permute.xlu0 %981
      %983 = vrot.lane.b32.xlu0 %v740, 16
      %v984 = vpop.permute.xlu0 %983
      %985 = vrot.lane.b32.xlu0 %v752, 16
      %v986 = vpop.permute.xlu0 %985
      %987 = vrot.lane.b32.xlu0 %v764, 16
      %v988 = vpop.permute.xlu0 %987
      %989 = vrot.lane.b32.xlu0 %v857, 16
      %v990 = vpop.permute.xlu0 %989
      %991 = vrot.lane.b32.xlu0 %v803, 20
      %v992 = vpop.permute.xlu0 %991
      %993 = vrot.lane.b32.xlu0 %v806, 20
      %v994 = vpop.permute.xlu0 %993
      %995 = vrot.lane.b32.xlu0 %v809, 20
      %v996 = vpop.permute.xlu0 %995
      %997 = vrot.lane.b32.xlu0 %v812, 20
      %v998 = vpop.permute.xlu0 %997
      %999 = vrot.lane.b32.xlu0 %v815, 20
      %v1000 = vpop.permute.xlu0 %999
      %1001 = vrot.lane.b32.xlu0 %v818, 20
      %v1002 = vpop.permute.xlu0 %1001
      %1003 = vrot.lane.b32.xlu0 %v821, 20
      %v1004 = vpop.permute.xlu0 %1003
      %1005 = vrot.lane.b32.xlu0 %v824, 20
      %v1006 = vpop.permute.xlu0 %1005
      %1007 = vrot.lane.b32.xlu0 %v827, 20
      %v1008 = vpop.permute.xlu0 %1007
      %1009 = vrot.lane.b32.xlu0 %v830, 20
      %v1010 = vpop.permute.xlu0 %1009
      %1011 = vrot.lane.b32.xlu0 %v833, 20
      %v1012 = vpop.permute.xlu0 %1011
      %1013 = vrot.lane.b32.xlu0 %v836, 20
      %v1014 = vpop.permute.xlu0 %1013
      %1015 = vrot.lane.b32.xlu0 %v839, 20
      %v1016 = vpop.permute.xlu0 %1015
      %1017 = vrot.lane.b32.xlu0 %v842, 20
      %v1018 = vpop.permute.xlu0 %1017
      %1019 = vrot.lane.b32.xlu0 %v845, 20
      %v1020 = vpop.permute.xlu0 %1019
      %1021 = vrot.lane.b32.xlu0 %v862, 20
      %v1022 = vpop.permute.xlu0 %1021
      %1023 = vrot.lane.b32.xlu0 %v540, 24
      %v1024 = vpop.permute.xlu0 %1023
      %1025 = vrot.lane.b32.xlu0 %v541, 24
      %v1026 = vpop.permute.xlu0 %1025
      %1027 = vrot.lane.b32.xlu0 %v542, 24
      %v1028 = vpop.permute.xlu0 %1027
      %1029 = vrot.lane.b32.xlu0 %v543, 24
      %v1030 = vpop.permute.xlu0 %1029
      %1031 = vrot.lane.b32.xlu0 %v544, 24
      %v1032 = vpop.permute.xlu0 %1031
      %1033 = vrot.lane.b32.xlu0 %v545, 24
      %v1034 = vpop.permute.xlu0 %1033
      %1035 = vrot.lane.b32.xlu0 %v546, 24
      %v1036 = vpop.permute.xlu0 %1035
      %1037 = vrot.lane.b32.xlu0 %v547, 24
      %v1038 = vpop.permute.xlu0 %1037
      %1039 = vrot.lane.b32.xlu0 %v548, 24
      %v1040 = vpop.permute.xlu0 %1039
      %1041 = vrot.lane.b32.xlu0 %v549, 24
      %v1042 = vpop.permute.xlu0 %1041
      %1043 = vrot.lane.b32.xlu0 %v550, 24
      %v1044 = vpop.permute.xlu0 %1043
      %1045 = vrot.lane.b32.xlu0 %v551, 24
      %v1046 = vpop.permute.xlu0 %1045
      %1047 = vrot.lane.b32.xlu0 %v552, 24
      %v1048 = vpop.permute.xlu0 %1047
      %1049 = vrot.lane.b32.xlu0 %v553, 24
      %v1050 = vpop.permute.xlu0 %1049
      %1051 = vrot.lane.b32.xlu0 %v554, 24
      %v1052 = vpop.permute.xlu0 %1051
      %1053 = vrot.lane.b32.xlu0 %v538, 24
      %v1054 = vpop.permute.xlu0 %1053
      %1055 = vrot.lane.b32.xlu0 %v608, 28
      %v1056 = vpop.permute.xlu0 %1055
      %1057 = vrot.lane.b32.xlu0 %v620, 28
      %v1058 = vpop.permute.xlu0 %1057
      %1059 = vrot.lane.b32.xlu0 %v632, 28
      %v1060 = vpop.permute.xlu0 %1059
      %1061 = vrot.lane.b32.xlu0 %v644, 28
      %v1062 = vpop.permute.xlu0 %1061
      %1063 = vrot.lane.b32.xlu0 %v656, 28
      %v1064 = vpop.permute.xlu0 %1063
      %1065 = vrot.lane.b32.xlu0 %v668, 28
      %v1066 = vpop.permute.xlu0 %1065
      %1067 = vrot.lane.b32.xlu0 %v680, 28
      %v1068 = vpop.permute.xlu0 %1067
      %1069 = vrot.lane.b32.xlu0 %v692, 28
      %v1070 = vpop.permute.xlu0 %1069
      %1071 = vrot.lane.b32.xlu0 %v704, 28
      %v1072 = vpop.permute.xlu0 %1071
      %1073 = vrot.lane.b32.xlu0 %v716, 28
      %v1074 = vpop.permute.xlu0 %1073
      %1075 = vrot.lane.b32.xlu0 %v728, 28
      %v1076 = vpop.permute.xlu0 %1075
      %1077 = vrot.lane.b32.xlu0 %v740, 28
      %v1078 = vpop.permute.xlu0 %1077
      %1079 = vrot.lane.b32.xlu0 %v752, 28
      %v1080 = vpop.permute.xlu0 %1079
      %1081 = vrot.lane.b32.xlu0 %v764, 28
      %v1082 = vpop.permute.xlu0 %1081
      %1083 = vrot.lane.b32.xlu0 %v857, 28
      %v1084 = vpop.permute.xlu0 %1083
      %1085 = vrot.lane.b32.xlu0 %v584, 28
      %v1086 = vpop.permute.xlu0 %1085
      %1087 = vrot.lane.b32.xlu0 %v806, 32
      %v1088 = vpop.permute.xlu0 %1087
      %1089 = vrot.lane.b32.xlu0 %v809, 32
      %v1090 = vpop.permute.xlu0 %1089
      %1091 = vrot.lane.b32.xlu0 %v812, 32
      %v1092 = vpop.permute.xlu0 %1091
      %1093 = vrot.lane.b32.xlu0 %v815, 32
      %v1094 = vpop.permute.xlu0 %1093
      %1095 = vrot.lane.b32.xlu0 %v818, 32
      %v1096 = vpop.permute.xlu0 %1095
      %1097 = vrot.lane.b32.xlu0 %v821, 32
      %v1098 = vpop.permute.xlu0 %1097
      %1099 = vrot.lane.b32.xlu0 %v824, 32
      %v1100 = vpop.permute.xlu0 %1099
      %1101 = vrot.lane.b32.xlu0 %v827, 32
      %v1102 = vpop.permute.xlu0 %1101
      %1103 = vrot.lane.b32.xlu0 %v830, 32
      %v1104 = vpop.permute.xlu0 %1103
      %1105 = vrot.lane.b32.xlu0 %v833, 32
      %v1106 = vpop.permute.xlu0 %1105
      %1107 = vrot.lane.b32.xlu0 %v836, 32
      %v1108 = vpop.permute.xlu0 %1107
      %1109 = vrot.lane.b32.xlu0 %v839, 32
      %v1110 = vpop.permute.xlu0 %1109
      %1111 = vrot.lane.b32.xlu0 %v842, 32
      %v1112 = vpop.permute.xlu0 %1111
      %1113 = vrot.lane.b32.xlu0 %v845, 32
      %v1114 = vpop.permute.xlu0 %1113
      %1115 = vrot.lane.b32.xlu0 %v862, 32
      %v1116 = vpop.permute.xlu0 %1115
      %1117 = vrot.lane.b32.xlu0 %v800, 32
      %v1118 = vpop.permute.xlu0 %1117
      %vm1119 = vcmask 31744
      %v1121 = vsel %vm1119, %v538, %v864
      %v1123 = vsel %vm1119, %v539, %v866
      %v1125 = vsel %vm1119, %v540, %v868
      %v1127 = vsel %vm1119, %v541, %v870
      %v1129 = vsel %vm1119, %v542, %v872
      %v1131 = vsel %vm1119, %v543, %v874
      %v1133 = vsel %vm1119, %v544, %v876
      %v1135 = vsel %vm1119, %v545, %v878
      %v1137 = vsel %vm1119, %v546, %v880
      %v1139 = vsel %vm1119, %v547, %v882
      %v1141 = vsel %vm1119, %v548, %v884
      %v1143 = vsel %vm1119, %v549, %v886
      %v1145 = vsel %vm1119, %v550, %v888
      %v1147 = vsel %vm1119, %v551, %v890
      %v1149 = vsel %vm1119, %v552, %v892
      %v1151 = vsel %vm1119, %v553, %v894
      %vm1152 = vcmask 64512
      %v1154 = vsel %vm1152, %v1121, %v896
      %v1156 = vsel %vm1152, %v1123, %v898
      %v1158 = vsel %vm1152, %v1125, %v900
      %v1160 = vsel %vm1152, %v1127, %v902
      %v1162 = vsel %vm1152, %v1129, %v904
      %v1164 = vsel %vm1152, %v1131, %v906
      %v1166 = vsel %vm1152, %v1133, %v908
      %v1168 = vsel %vm1152, %v1135, %v910
      %v1170 = vsel %vm1152, %v1137, %v912
      %v1172 = vsel %vm1152, %v1139, %v914
      %v1174 = vsel %vm1152, %v1141, %v916
      %v1176 = vsel %vm1152, %v1143, %v918
      %v1178 = vsel %vm1152, %v1145, %v920
      %v1180 = vsel %vm1152, %v1147, %v922
      %v1182 = vsel %vm1152, %v1149, %v924
      %v1184 = vsel %vm1152, %v1151, %v926
      %vm1185 = vcmask 97280
      %v1187 = vsel %vm1185, %v1154, %v928
      %v1189 = vsel %vm1185, %v1156, %v930
      %v1191 = vsel %vm1185, %v1158, %v932
      %v1193 = vsel %vm1185, %v1160, %v934
      %v1195 = vsel %vm1185, %v1162, %v936
      %v1197 = vsel %vm1185, %v1164, %v938
      %v1199 = vsel %vm1185, %v1166, %v940
      %v1201 = vsel %vm1185, %v1168, %v942
      %v1203 = vsel %vm1185, %v1170, %v944
      %v1205 = vsel %vm1185, %v1172, %v946
      %v1207 = vsel %vm1185, %v1174, %v948
      %v1209 = vsel %vm1185, %v1176, %v950
      %v1211 = vsel %vm1185, %v1178, %v952
      %v1213 = vsel %vm1185, %v1180, %v954
      %v1215 = vsel %vm1185, %v1182, %v956
      %v1217 = vsel %vm1185, %v1184, %v958
      %vm1218 = vcmask 130048
      %v1220 = vsel %vm1218, %v1187, %v960
      %v1222 = vsel %vm1218, %v1189, %v962
      %v1224 = vsel %vm1218, %v1191, %v964
      %v1226 = vsel %vm1218, %v1193, %v966
      %v1228 = vsel %vm1218, %v1195, %v968
      %v1230 = vsel %vm1218, %v1197, %v970
      %v1232 = vsel %vm1218, %v1199, %v972
      %v1234 = vsel %vm1218, %v1201, %v974
      %v1236 = vsel %vm1218, %v1203, %v976
      %v1238 = vsel %vm1218, %v1205, %v978
      %v1240 = vsel %vm1218, %v1207, %v980
      %v1242 = vsel %vm1218, %v1209, %v982
      %v1244 = vsel %vm1218, %v1211, %v984
      %v1246 = vsel %vm1218, %v1213, %v986
      %v1248 = vsel %vm1218, %v1215, %v988
      %v1250 = vsel %vm1218, %v1217, %v990
      %vm1251 = vcmask 162816
      %v1253 = vsel %vm1251, %v1220, %v992
      %v1255 = vsel %vm1251, %v1222, %v994
      %v1257 = vsel %vm1251, %v1224, %v996
      %v1259 = vsel %vm1251, %v1226, %v998
      %v1261 = vsel %vm1251, %v1228, %v1000
      %v1263 = vsel %vm1251, %v1230, %v1002
      %v1265 = vsel %vm1251, %v1232, %v1004
      %v1267 = vsel %vm1251, %v1234, %v1006
      %v1269 = vsel %vm1251, %v1236, %v1008
      %v1271 = vsel %vm1251, %v1238, %v1010
      %v1273 = vsel %vm1251, %v1240, %v1012
      %v1275 = vsel %vm1251, %v1242, %v1014
      %v1277 = vsel %vm1251, %v1244, %v1016
      %v1279 = vsel %vm1251, %v1246, %v1018
      %v1281 = vsel %vm1251, %v1248, %v1020
      %v1283 = vsel %vm1251, %v1250, %v1022
      %vm1284 = vcmask 195584
      %v1286 = vsel %vm1284, %v1253, %v1024
      %v1288 = vsel %vm1284, %v1255, %v1026
      %v1290 = vsel %vm1284, %v1257, %v1028
      %v1292 = vsel %vm1284, %v1259, %v1030
      %v1294 = vsel %vm1284, %v1261, %v1032
      %v1296 = vsel %vm1284, %v1263, %v1034
      %v1298 = vsel %vm1284, %v1265, %v1036
      %v1300 = vsel %vm1284, %v1267, %v1038
      %v1302 = vsel %vm1284, %v1269, %v1040
      %v1304 = vsel %vm1284, %v1271, %v1042
      %v1306 = vsel %vm1284, %v1273, %v1044
      %v1308 = vsel %vm1284, %v1275, %v1046
      %v1310 = vsel %vm1284, %v1277, %v1048
      %v1312 = vsel %vm1284, %v1279, %v1050
      %v1314 = vsel %vm1284, %v1281, %v1052
      %v1316 = vsel %vm1284, %v1283, %v1054
      %vm1317 = vcmask 228352
      %v1319 = vsel %vm1317, %v1286, %v1056
      %v1321 = vsel %vm1317, %v1288, %v1058
      %v1323 = vsel %vm1317, %v1290, %v1060
      %v1325 = vsel %vm1317, %v1292, %v1062
      %v1327 = vsel %vm1317, %v1294, %v1064
      %v1329 = vsel %vm1317, %v1296, %v1066
      %v1331 = vsel %vm1317, %v1298, %v1068
      %v1333 = vsel %vm1317, %v1300, %v1070
      %v1335 = vsel %vm1317, %v1302, %v1072
      %v1337 = vsel %vm1317, %v1304, %v1074
      %v1339 = vsel %vm1317, %v1306, %v1076
      %v1341 = vsel %vm1317, %v1308, %v1078
      %v1343 = vsel %vm1317, %v1310, %v1080
      %v1345 = vsel %vm1317, %v1312, %v1082
      %v1347 = vsel %vm1317, %v1314, %v1084
      %v1349 = vsel %vm1317, %v1316, %v1086
      %vm1350 = vcmask 261120
      %v1352 = vsel %vm1350, %v1319, %v1088
      %v1354 = vsel %vm1350, %v1321, %v1090
      %v1356 = vsel %vm1350, %v1323, %v1092
      %v1358 = vsel %vm1350, %v1325, %v1094
      %v1360 = vsel %vm1350, %v1327, %v1096
      %v1362 = vsel %vm1350, %v1329, %v1098
      %v1364 = vsel %vm1350, %v1331, %v1100
      %v1366 = vsel %vm1350, %v1333, %v1102
      %v1368 = vsel %vm1350, %v1335, %v1104
      %v1370 = vsel %vm1350, %v1337, %v1106
      %v1372 = vsel %vm1350, %v1339, %v1108
      %v1374 = vsel %vm1350, %v1341, %v1110
      %v1376 = vsel %vm1350, %v1343, %v1112
      %v1378 = vsel %vm1350, %v1345, %v1114
      %v1380 = vsel %vm1350, %v1347, %v1116
      %v1382 = vsel %vm1350, %v1349, %v1118
      %v1383 = vld [vmem:[%s1] sm:$0xf]
      %v1384 = vld [vmem:[%s1 + $0x4] sm:$0xf]
      %v1385 = vld [vmem:[%s1 + $0x8] sm:$0xf]
      %v1386 = vld [vmem:[%s1 + $0xc] sm:$0xf]
      %v1387 = vld [vmem:[%s1 + $0x10] sm:$0x3]
      %v1393 = vunpack.c.l.b16 %v1383
      %v1394 = vunpack.c.l.b16 %v1384
      %v1395 = vunpack.c.l.b16 %v1385
      %v1396 = vunpack.c.l.b16 %v1386
      %v1397 = vunpack.c.l.b16 %v1387
      %v1398 = vpack.c.b16 %v1394, %v1393
      %v1399 = vpack.c.b16 %v1396, %v1395
      %v1400 = vpack.c.b16 %v1397, %v1397
      %vm1403 = vcmask 293888
      %v1404 = vsel %vm1403, %v1352, 0
      %v1406 = vsel %vm1403, %v1354, 0
      %v1408 = vsel %vm1403, %v1356, 0
      %v1410 = vsel %vm1403, %v1358, 0
      %v1412 = vsel %vm1403, %v1360, 0
      %v1414 = vsel %vm1403, %v1362, 0
      %v1416 = vsel %vm1403, %v1364, 0
      %v1418 = vsel %vm1403, %v1366, 0
      %v1420 = vsel %vm1403, %v1368, 0
      %v1422 = vsel %vm1403, %v1370, 0
      %v1424 = vsel %vm1403, %v1372, 0
      %v1426 = vsel %vm1403, %v1374, 0
      %v1428 = vsel %vm1403, %v1376, 0
      %v1430 = vsel %vm1403, %v1378, 0
      %v1432 = vsel %vm1403, %v1380, 0
      %v1434 = vsel %vm1403, %v1382, 0
      %vm1436 = vcmask 1041408
      %v1438 = vsel %vm1436, %v1400, 0
      %1440 = vmatprep.subr.bf16.mxu0 0
      %1441 = vmatpush1.bf16.msra.mxu0 0
      %1442 = vmatprep.subr.bf16.mxu0 0
      %1443 = vmatpush1.bf16.msra.mxu0 0
      %1444 = vmatprep.subr.bf16.mxu0 0
      %1445 = vmatpush1.bf16.msra.mxu0 0
      %1446 = vmatprep.subr.bf16.mxu0 0
      %1447 = vmatpush1.bf16.msra.mxu0 0
      %1448 = vmatprep.subr.bf16.mxu0 0
      %1449 = vmatpush1.bf16.msra.mxu0 0
      %1450 = vmatprep.subr.bf16.mxu0 0
      %1451 = vmatpush1.bf16.msra.mxu0 %v1438
      %1452 = vmatprep.subr.bf16.mxu0 0
      %1453 = vmatpush1.bf16.msra.mxu0 %v1399
      %1454 = vmatprep.subr.bf16.mxu0 0
      %1455 = vmatpush1.bf16.msra.mxu0 %v1398
      %1456 = vmatprep.subr.bf16.mxu0 0
      %1457 = vmatpush2.bf16.msra.mxu0 0
      %1458 = vmatprep.subr.bf16.mxu0 0
      %1459 = vmatpush2.bf16.msra.mxu0 0
      %1460 = vmatprep.subr.bf16.mxu0 0
      %1461 = vmatpush2.bf16.msra.mxu0 0
      %1462 = vmatprep.subr.bf16.mxu0 0
      %1463 = vmatpush2.bf16.msra.mxu0 0
      %1464 = vmatprep.subr.bf16.mxu0 0
      %1465 = vmatpush2.bf16.msra.mxu0 0
      %1466 = vmatprep.subr.bf16.mxu0 0
      %1467 = vmatpush2.bf16.msra.mxu0 0
      %1468 = vmatprep.subr.bf16.mxu0 0
      %1469 = vmatpush2.bf16.msra.mxu0 0
      %1470 = vmatprep.subr.bf16.mxu0 0
      %1471 = vmatpush2.bf16.msra.mxu0 0
      %1472 = vmatprep.mubr.bf16.mxu0 0
      %1473 = vmatmul.mubr.bf16.gmra.mxu0 %v1404
      %v1474 = vpop.f32.mrf.mxu0
      %v1475 = vadd.f32 0.0, %v1474
      %v1476 = vpop.f32.mrf.mxu0
      %v1477 = vpop.f32.mrf.mxu0
      %v1478 = vadd.f32 0.0, %v1477
      %v1479 = vpop.f32.mrf.mxu0
      %1480 = vmatprep.mubr.bf16.mxu0 0
      %1481 = vmatmul.mubr.bf16.gmra.mxu0 %v1406
      %v1482 = vpop.f32.mrf.mxu0
      %v1483 = vadd.f32 0.0, %v1482
      %v1484 = vpop.f32.mrf.mxu0
      %v1485 = vpop.f32.mrf.mxu0
      %v1486 = vadd.f32 0.0, %v1485
      %v1487 = vpop.f32.mrf.mxu0
      %1488 = vmatprep.mubr.bf16.mxu0 0
      %1489 = vmatmul.mubr.bf16.gmra.mxu0 %v1408
      %v1490 = vpop.f32.mrf.mxu0
      %v1491 = vadd.f32 0.0, %v1490
      %v1492 = vpop.f32.mrf.mxu0
      %v1493 = vpop.f32.mrf.mxu0
      %v1494 = vadd.f32 0.0, %v1493
      %v1495 = vpop.f32.mrf.mxu0
      %1496 = vmatprep.mubr.bf16.mxu0 0
      %1497 = vmatmul.mubr.bf16.gmra.mxu0 %v1410
      %v1498 = vpop.f32.mrf.mxu0
      %v1499 = vadd.f32 0.0, %v1498
      %v1500 = vpop.f32.mrf.mxu0
      %v1501 = vpop.f32.mrf.mxu0
      %v1502 = vadd.f32 0.0, %v1501
      %v1503 = vpop.f32.mrf.mxu0
      %1504 = vmatprep.mubr.bf16.mxu0 0
      %1505 = vmatmul.mubr.bf16.gmra.mxu0 %v1412
      %v1506 = vpop.f32.mrf.mxu0
      %v1507 = vadd.f32 0.0, %v1506
      %v1508 = vpop.f32.mrf.mxu0
      %v1509 = vpop.f32.mrf.mxu0
      %v1510 = vadd.f32 0.0, %v1509
      %v1511 = vpop.f32.mrf.mxu0
      %1512 = vmatprep.mubr.bf16.mxu0 0
      %1513 = vmatmul.mubr.bf16.gmra.mxu0 %v1414
      %v1514 = vpop.f32.mrf.mxu0
      %v1515 = vadd.f32 0.0, %v1514
      %v1516 = vpop.f32.mrf.mxu0
      %v1517 = vpop.f32.mrf.mxu0
      %v1518 = vadd.f32 0.0, %v1517
      %v1519 = vpop.f32.mrf.mxu0
      %1520 = vmatprep.mubr.bf16.mxu0 0
      %1521 = vmatmul.mubr.bf16.gmra.mxu0 %v1416
      %v1522 = vpop.f32.mrf.mxu0
      %v1523 = vadd.f32 0.0, %v1522
      %v1524 = vpop.f32.mrf.mxu0
      %v1525 = vpop.f32.mrf.mxu0
      %v1526 = vadd.f32 0.0, %v1525
      %v1527 = vpop.f32.mrf.mxu0
      %1528 = vmatprep.mubr.bf16.mxu0 0
      %1529 = vmatmul.mubr.bf16.gmra.mxu0 %v1418
      %v1530 = vpop.f32.mrf.mxu0
      %v1531 = vadd.f32 0.0, %v1530
      %v1532 = vpop.f32.mrf.mxu0
      %v1533 = vpop.f32.mrf.mxu0
      %v1534 = vadd.f32 0.0, %v1533
      %v1535 = vpop.f32.mrf.mxu0
      %1536 = vmatprep.mubr.bf16.mxu0 0
      %1537 = vmatmul.mubr.bf16.gmra.mxu0 %v1420
      %v1538 = vpop.f32.mrf.mxu0
      %v1539 = vadd.f32 0.0, %v1538
      %v1540 = vpop.f32.mrf.mxu0
      %v1541 = vpop.f32.mrf.mxu0
      %v1542 = vadd.f32 0.0, %v1541
      %v1543 = vpop.f32.mrf.mxu0
      %1544 = vmatprep.mubr.bf16.mxu0 0
      %1545 = vmatmul.mubr.bf16.gmra.mxu0 %v1422
      %v1546 = vpop.f32.mrf.mxu0
      %v1547 = vadd.f32 0.0, %v1546
      %v1548 = vpop.f32.mrf.mxu0
      %v1549 = vpop.f32.mrf.mxu0
      %v1550 = vadd.f32 0.0, %v1549
      %v1551 = vpop.f32.mrf.mxu0
      %1552 = vmatprep.mubr.bf16.mxu0 0
      %1553 = vmatmul.mubr.bf16.gmra.mxu0 %v1424
      %v1554 = vpop.f32.mrf.mxu0
      %v1555 = vadd.f32 0.0, %v1554
      %v1556 = vpop.f32.mrf.mxu0
      %v1557 = vpop.f32.mrf.mxu0
      %v1558 = vadd.f32 0.0, %v1557
      %v1559 = vpop.f32.mrf.mxu0
      %1560 = vmatprep.mubr.bf16.mxu0 0
      %1561 = vmatmul.mubr.bf16.gmra.mxu0 %v1426
      %v1562 = vpop.f32.mrf.mxu0
      %v1563 = vadd.f32 0.0, %v1562
      %v1564 = vpop.f32.mrf.mxu0
      %v1565 = vpop.f32.mrf.mxu0
      %v1566 = vadd.f32 0.0, %v1565
      %v1567 = vpop.f32.mrf.mxu0
      %1568 = vmatprep.mubr.bf16.mxu0 0
      %1569 = vmatmul.mubr.bf16.gmra.mxu0 %v1428
      %v1570 = vpop.f32.mrf.mxu0
      %v1571 = vadd.f32 0.0, %v1570
      %v1572 = vpop.f32.mrf.mxu0
      %v1573 = vpop.f32.mrf.mxu0
      %v1574 = vadd.f32 0.0, %v1573
      %v1575 = vpop.f32.mrf.mxu0
      %1576 = vmatprep.mubr.bf16.mxu0 0
      %1577 = vmatmul.mubr.bf16.gmra.mxu0 %v1430
      %v1578 = vpop.f32.mrf.mxu0
      %v1579 = vadd.f32 0.0, %v1578
      %v1580 = vpop.f32.mrf.mxu0
      %v1581 = vpop.f32.mrf.mxu0
      %v1582 = vadd.f32 0.0, %v1581
      %v1583 = vpop.f32.mrf.mxu0
      %1584 = vmatprep.mubr.bf16.mxu0 0
      %1585 = vmatmul.mubr.bf16.gmra.mxu0 %v1432
      %v1586 = vpop.f32.mrf.mxu0
      %v1587 = vadd.f32 0.0, %v1586
      %v1588 = vpop.f32.mrf.mxu0
      %v1589 = vpop.f32.mrf.mxu0
      %v1590 = vadd.f32 0.0, %v1589
      %v1591 = vpop.f32.mrf.mxu0
      %1592 = vmatprep.mubr.bf16.mxu0 0
      %1593 = vmatmul.mubr.bf16.gmra.mxu0 %v1434
      %v1594 = vpop.f32.mrf.mxu0
      %v1595 = vadd.f32 0.0, %v1594
      %v1596 = vpop.f32.mrf.mxu0
      %v1597 = vpop.f32.mrf.mxu0
      %v1598 = vadd.f32 0.0, %v1597
      %v1599 = vpop.f32.mrf.mxu0
      %1600 = vdwg.mxu0
      %v1601 = vld [vmem:[%s2] sm:$0x1]
      %v1603 = vlaneseq
      %v1604 = vshrl.u32 %v1603, 7
      %v1605 = vsub.s32 0, %v1604
      %v1606 = vrot.slane %v1601, %v1605
      %v1608 = vmul.f32 %v1475, %v1606
      %v1609 = vmul.f32 %v1478, %v1606
      %v1610 = vmul.f32 %v1483, %v1606
      %v1611 = vmul.f32 %v1486, %v1606
      %v1612 = vmul.f32 %v1491, %v1606
      %v1613 = vmul.f32 %v1494, %v1606
      %v1614 = vmul.f32 %v1499, %v1606
      %v1615 = vmul.f32 %v1502, %v1606
      %v1616 = vmul.f32 %v1507, %v1606
      %v1617 = vmul.f32 %v1510, %v1606
      %v1618 = vmul.f32 %v1515, %v1606
      %v1619 = vmul.f32 %v1518, %v1606
      %v1620 = vmul.f32 %v1523, %v1606
      %v1621 = vmul.f32 %v1526, %v1606
      %v1622 = vmul.f32 %v1531, %v1606
      %v1623 = vmul.f32 %v1534, %v1606
      %v1624 = vmul.f32 %v1539, %v1606
      %v1625 = vmul.f32 %v1542, %v1606
      %v1626 = vmul.f32 %v1547, %v1606
      %v1627 = vmul.f32 %v1550, %v1606
      %v1628 = vmul.f32 %v1555, %v1606
      %v1629 = vmul.f32 %v1558, %v1606
      %v1630 = vmul.f32 %v1563, %v1606
      %v1631 = vmul.f32 %v1566, %v1606
      %v1632 = vmul.f32 %v1571, %v1606
      %v1633 = vmul.f32 %v1574, %v1606
      %v1634 = vmul.f32 %v1579, %v1606
      %v1635 = vmul.f32 %v1582, %v1606
      %v1636 = vmul.f32 %v1587, %v1606
      %v1637 = vmul.f32 %v1590, %v1606
      %v1638 = vmul.f32 %v1595, %v1606
      %v1639 = vmul.f32 %v1598, %v1606
      %v1640 = vld [vmem:[%s3] sm:$0x1]
      %v1642 = vlaneseq
      %v1643 = vshrl.u32 %v1642, 7
      %v1644 = vsub.s32 0, %v1643
      %v1645 = vrot.slane %v1640, %v1644
      %v1647 = vadd.f32 %v1608, %v1645
      %v1648 = vadd.f32 %v1609, %v1645
      %v1649 = vadd.f32 %v1610, %v1645
      %v1650 = vadd.f32 %v1611, %v1645
      %v1651 = vadd.f32 %v1612, %v1645
      %v1652 = vadd.f32 %v1613, %v1645
      %v1653 = vadd.f32 %v1614, %v1645
      %v1654 = vadd.f32 %v1615, %v1645
      %v1655 = vadd.f32 %v1616, %v1645
      %v1656 = vadd.f32 %v1617, %v1645
      %v1657 = vadd.f32 %v1618, %v1645
      %v1658 = vadd.f32 %v1619, %v1645
      %v1659 = vadd.f32 %v1620, %v1645
      %v1660 = vadd.f32 %v1621, %v1645
      %v1661 = vadd.f32 %v1622, %v1645
      %v1662 = vadd.f32 %v1623, %v1645
      %v1663 = vadd.f32 %v1624, %v1645
      %v1664 = vadd.f32 %v1625, %v1645
      %v1665 = vadd.f32 %v1626, %v1645
      %v1666 = vadd.f32 %v1627, %v1645
      %v1667 = vadd.f32 %v1628, %v1645
      %v1668 = vadd.f32 %v1629, %v1645
      %v1669 = vadd.f32 %v1630, %v1645
      %v1670 = vadd.f32 %v1631, %v1645
      %v1671 = vadd.f32 %v1632, %v1645
      %v1672 = vadd.f32 %v1633, %v1645
      %v1673 = vadd.f32 %v1634, %v1645
      %v1674 = vadd.f32 %v1635, %v1645
      %v1675 = vadd.f32 %v1636, %v1645
      %v1676 = vadd.f32 %v1637, %v1645
      %v1677 = vadd.f32 %v1638, %v1645
      %v1678 = vadd.f32 %v1639, %v1645
      %v1679 = vmax.f32 %v1647, 0.0
      %v1680 = vmax.f32 %v1648, 0.0
      %v1681 = vmax.f32 %v1649, 0.0
      %v1682 = vmax.f32 %v1650, 0.0
      %v1683 = vmax.f32 %v1651, 0.0
      %v1684 = vmax.f32 %v1652, 0.0
      %v1685 = vmax.f32 %v1653, 0.0
      %v1686 = vmax.f32 %v1654, 0.0
      %v1687 = vmax.f32 %v1655, 0.0
      %v1688 = vmax.f32 %v1656, 0.0
      %v1689 = vmax.f32 %v1657, 0.0
      %v1690 = vmax.f32 %v1658, 0.0
      %v1691 = vmax.f32 %v1659, 0.0
      %v1692 = vmax.f32 %v1660, 0.0
      %v1693 = vmax.f32 %v1661, 0.0
      %v1694 = vmax.f32 %v1662, 0.0
      %v1695 = vmax.f32 %v1663, 0.0
      %v1696 = vmax.f32 %v1664, 0.0
      %v1697 = vmax.f32 %v1665, 0.0
      %v1698 = vmax.f32 %v1666, 0.0
      %v1699 = vmax.f32 %v1667, 0.0
      %v1700 = vmax.f32 %v1668, 0.0
      %v1701 = vmax.f32 %v1669, 0.0
      %v1702 = vmax.f32 %v1670, 0.0
      %v1703 = vmax.f32 %v1671, 0.0
      %v1704 = vmax.f32 %v1672, 0.0
      %v1705 = vmax.f32 %v1673, 0.0
      %v1706 = vmax.f32 %v1674, 0.0
      %v1707 = vmax.f32 %v1675, 0.0
      %v1708 = vmax.f32 %v1676, 0.0
      %v1709 = vmax.f32 %v1677, 0.0
      %v1710 = vmax.f32 %v1678, 0.0
      %v1711 = vpack.c.bf16 %v1680, %v1679
      %v1712 = vpack.c.bf16 %v1682, %v1681
      %v1713 = vpack.c.bf16 %v1684, %v1683
      %v1714 = vpack.c.bf16 %v1686, %v1685
      %v1715 = vpack.c.bf16 %v1688, %v1687
      %v1716 = vpack.c.bf16 %v1690, %v1689
      %v1717 = vpack.c.bf16 %v1692, %v1691
      %v1718 = vpack.c.bf16 %v1694, %v1693
      %v1719 = vpack.c.bf16 %v1696, %v1695
      %v1720 = vpack.c.bf16 %v1698, %v1697
      %v1721 = vpack.c.bf16 %v1700, %v1699
      %v1722 = vpack.c.bf16 %v1702, %v1701
      %v1723 = vpack.c.bf16 %v1704, %v1703
      %v1724 = vpack.c.bf16 %v1706, %v1705
      %v1725 = vpack.c.bf16 %v1708, %v1707
      %v1726 = vpack.c.bf16 %v1710, %v1709
      %v1728 = vshrl.u32 %v1711, 16
      %v1730 = vrot.slane %v1728, 7
      %v1731 = vshll.u32 %v1711, 16
      %v1733 = vor.u32 %v1730, %v1731
      %v1735 = vshrl.u32 %v1712, 16
      %v1737 = vrot.slane %v1735, 7
      %v1738 = vshll.u32 %v1712, 16
      %v1740 = vor.u32 %v1737, %v1738
      %v1742 = vshrl.u32 %v1713, 16
      %v1744 = vrot.slane %v1742, 7
      %v1745 = vshll.u32 %v1713, 16
      %v1747 = vor.u32 %v1744, %v1745
      %v1749 = vshrl.u32 %v1714, 16
      %v1751 = vrot.slane %v1749, 7
      %v1752 = vshll.u32 %v1714, 16
      %v1754 = vor.u32 %v1751, %v1752
      %v1756 = vshrl.u32 %v1715, 16
      %v1758 = vrot.slane %v1756, 7
      %v1759 = vshll.u32 %v1715, 16
      %v1761 = vor.u32 %v1758, %v1759
      %v1763 = vshrl.u32 %v1716, 16
      %v1765 = vrot.slane %v1763, 7
      %v1766 = vshll.u32 %v1716, 16
      %v1768 = vor.u32 %v1765, %v1766
      %v1770 = vshrl.u32 %v1717, 16
      %v1772 = vrot.slane %v1770, 7
      %v1773 = vshll.u32 %v1717, 16
      %v1775 = vor.u32 %v1772, %v1773
      %v1777 = vshrl.u32 %v1718, 16
      %v1779 = vrot.slane %v1777, 7
      %v1780 = vshll.u32 %v1718, 16
      %v1782 = vor.u32 %v1779, %v1780
      %v1784 = vshrl.u32 %v1719, 16
      %v1786 = vrot.slane %v1784, 7
      %v1787 = vshll.u32 %v1719, 16
      %v1789 = vor.u32 %v1786, %v1787
      %v1791 = vshrl.u32 %v1720, 16
      %v1793 = vrot.slane %v1791, 7
      %v1794 = vshll.u32 %v1720, 16
      %v1796 = vor.u32 %v1793, %v1794
      %v1798 = vshrl.u32 %v1721, 16
      %v1800 = vrot.slane %v1798, 7
      %v1801 = vshll.u32 %v1721, 16
      %v1803 = vor.u32 %v1800, %v1801
      %v1805 = vshrl.u32 %v1722, 16
      %v1807 = vrot.slane %v1805, 7
      %v1808 = vshll.u32 %v1722, 16
      %v1810 = vor.u32 %v1807, %v1808
      %v1812 = vshrl.u32 %v1723, 16
      %v1814 = vrot.slane %v1812, 7
      %v1815 = vshll.u32 %v1723, 16
      %v1817 = vor.u32 %v1814, %v1815
      %v1819 = vshrl.u32 %v1724, 16
      %v1821 = vrot.slane %v1819, 7
      %v1822 = vshll.u32 %v1724, 16
      %v1824 = vor.u32 %v1821, %v1822
      %v1826 = vshrl.u32 %v1725, 16
      %v1828 = vrot.slane %v1826, 7
      %v1829 = vshll.u32 %v1725, 16
      %v1831 = vor.u32 %v1828, %v1829
      %v1833 = vshrl.u32 %v1726, 16
      %v1835 = vrot.slane %v1833, 7
      %v1836 = vshll.u32 %v1726, 16
      %v1838 = vor.u32 %v1835, %v1836
      %v1871 = vsel %vm537, 0, %v1733
      %v1872 = vsel %vm537, 0, %v1740
      %v1873 = vsel %vm537, 0, %v1747
      %v1874 = vsel %vm537, 0, %v1754
      %v1875 = vsel %vm537, 0, %v1761
      %v1876 = vsel %vm537, 0, %v1768
      %v1877 = vsel %vm537, 0, %v1775
      %v1878 = vsel %vm537, 0, %v1782
      %v1879 = vsel %vm537, 0, %v1789
      %v1880 = vsel %vm537, 0, %v1796
      %v1881 = vsel %vm537, 0, %v1803
      %v1882 = vsel %vm537, 0, %v1810
      %v1883 = vsel %vm537, 0, %v1817
      %v1884 = vsel %vm537, 0, %v1824
      %v1885 = vsel %vm537, 0, %v1831
      %v1886 = vsel %vm537, 0, %v1838
      %v1887 = vsel %vm537, %v1730, 0
      %v1888 = vsel %vm537, %v1737, 0
      %v1889 = vsel %vm537, %v1744, 0
      %v1890 = vsel %vm537, %v1751, 0
      %v1891 = vsel %vm537, %v1758, 0
      %v1892 = vsel %vm537, %v1765, 0
      %v1893 = vsel %vm537, %v1772, 0
      %v1894 = vsel %vm537, %v1779, 0
      %v1895 = vsel %vm537, %v1786, 0
      %v1896 = vsel %vm537, %v1793, 0
      %v1897 = vsel %vm537, %v1800, 0
      %v1898 = vsel %vm537, %v1807, 0
      %v1899 = vsel %vm537, %v1814, 0
      %v1900 = vsel %vm537, %v1821, 0
      %v1901 = vsel %vm537, %v1828, 0
      %v1902 = vsel %vm537, %v1835, 0
      %v1904 = vshrl.u32 %v1871, 16
      %v1906 = vshll.u32 %v1871, 16
      %v1908 = vrot.slane %v1906, 1
      %v1909 = vor.u32 %v1904, %v1908
      %v1911 = vshll.u32 %v1887, 16
      %v1913 = vrot.slane %v1911, 1
      %v1914 = vsel %vm572, %v1909, %v1913
      %v1916 = vshrl.u32 %v1872, 16
      %v1918 = vshll.u32 %v1872, 16
      %v1920 = vrot.slane %v1918, 1
      %v1921 = vor.u32 %v1916, %v1920
      %v1923 = vshll.u32 %v1888, 16
      %v1925 = vrot.slane %v1923, 1
      %v1926 = vsel %vm572, %v1921, %v1925
      %v1928 = vshrl.u32 %v1873, 16
      %v1930 = vshll.u32 %v1873, 16
      %v1932 = vrot.slane %v1930, 1
      %v1933 = vor.u32 %v1928, %v1932
      %v1935 = vshll.u32 %v1889, 16
      %v1937 = vrot.slane %v1935, 1
      %v1938 = vsel %vm572, %v1933, %v1937
      %v1940 = vshrl.u32 %v1874, 16
      %v1942 = vshll.u32 %v1874, 16
      %v1944 = vrot.slane %v1942, 1
      %v1945 = vor.u32 %v1940, %v1944
      %v1947 = vshll.u32 %v1890, 16
      %v1949 = vrot.slane %v1947, 1
      %v1950 = vsel %vm572, %v1945, %v1949
      %v1952 = vshrl.u32 %v1875, 16
      %v1954 = vshll.u32 %v1875, 16
      %v1956 = vrot.slane %v1954, 1
      %v1957 = vor.u32 %v1952, %v1956
      %v1959 = vshll.u32 %v1891, 16
      %v1961 = vrot.slane %v1959, 1
      %v1962 = vsel %vm572, %v1957, %v1961
      %v1964 = vshrl.u32 %v1876, 16
      %v1966 = vshll.u32 %v1876, 16
      %v1968 = vrot.slane %v1966, 1
      %v1969 = vor.u32 %v1964, %v1968
      %v1971 = vshll.u32 %v1892, 16
      %v1973 = vrot.slane %v1971, 1
      %v1974 = vsel %vm572, %v1969, %v1973
      %v1976 = vshrl.u32 %v1877, 16
      %v1978 = vshll.u32 %v1877, 16
      %v1980 = vrot.slane %v1978, 1
      %v1981 = vor.u32 %v1976, %v1980
      %v1983 = vshll.u32 %v1893, 16
      %v1985 = vrot.slane %v1983, 1
      %v1986 = vsel %vm572, %v1981, %v1985
      %v1988 = vshrl.u32 %v1878, 16
      %v1990 = vshll.u32 %v1878, 16
      %v1992 = vrot.slane %v1990, 1
      %v1993 = vor.u32 %v1988, %v1992
      %v1995 = vshll.u32 %v1894, 16
      %v1997 = vrot.slane %v1995, 1
      %v1998 = vsel %vm572, %v1993, %v1997
      %v2000 = vshrl.u32 %v1879, 16
      %v2002 = vshll.u32 %v1879, 16
      %v2004 = vrot.slane %v2002, 1
      %v2005 = vor.u32 %v2000, %v2004
      %v2007 = vshll.u32 %v1895, 16
      %v2009 = vrot.slane %v2007, 1
      %v2010 = vsel %vm572, %v2005, %v2009
      %v2012 = vshrl.u32 %v1880, 16
      %v2014 = vshll.u32 %v1880, 16
      %v2016 = vrot.slane %v2014, 1
      %v2017 = vor.u32 %v2012, %v2016
      %v2019 = vshll.u32 %v1896, 16
      %v2021 = vrot.slane %v2019, 1
      %v2022 = vsel %vm572, %v2017, %v2021
      %v2024 = vshrl.u32 %v1881, 16
      %v2026 = vshll.u32 %v1881, 16
      %v2028 = vrot.slane %v2026, 1
      %v2029 = vor.u32 %v2024, %v2028
      %v2031 = vshll.u32 %v1897, 16
      %v2033 = vrot.slane %v2031, 1
      %v2034 = vsel %vm572, %v2029, %v2033
      %v2036 = vshrl.u32 %v1882, 16
      %v2038 = vshll.u32 %v1882, 16
      %v2040 = vrot.slane %v2038, 1
      %v2041 = vor.u32 %v2036, %v2040
      %v2043 = vshll.u32 %v1898, 16
      %v2045 = vrot.slane %v2043, 1
      %v2046 = vsel %vm572, %v2041, %v2045
      %v2048 = vshrl.u32 %v1883, 16
      %v2050 = vshll.u32 %v1883, 16
      %v2052 = vrot.slane %v2050, 1
      %v2053 = vor.u32 %v2048, %v2052
      %v2055 = vshll.u32 %v1899, 16
      %v2057 = vrot.slane %v2055, 1
      %v2058 = vsel %vm572, %v2053, %v2057
      %v2060 = vshrl.u32 %v1884, 16
      %v2062 = vshll.u32 %v1884, 16
      %v2064 = vrot.slane %v2062, 1
      %v2065 = vor.u32 %v2060, %v2064
      %v2067 = vshll.u32 %v1900, 16
      %v2069 = vrot.slane %v2067, 1
      %v2070 = vsel %vm572, %v2065, %v2069
      %v2072 = vshrl.u32 %v1885, 16
      %v2074 = vshll.u32 %v1885, 16
      %v2076 = vrot.slane %v2074, 1
      %v2077 = vor.u32 %v2072, %v2076
      %v2079 = vshll.u32 %v1901, 16
      %v2081 = vrot.slane %v2079, 1
      %v2082 = vsel %vm572, %v2077, %v2081
      %v2113 = vrot.slane %v1871, 1
      %v2114 = vrot.slane %v1887, 1
      %v2115 = vsel %vm797, %v2113, %v2114
      %v2116 = vrot.slane %v1872, 1
      %v2117 = vrot.slane %v1888, 1
      %v2118 = vsel %vm797, %v2116, %v2117
      %v2119 = vrot.slane %v1873, 1
      %v2120 = vrot.slane %v1889, 1
      %v2121 = vsel %vm797, %v2119, %v2120
      %v2122 = vrot.slane %v1874, 1
      %v2123 = vrot.slane %v1890, 1
      %v2124 = vsel %vm797, %v2122, %v2123
      %v2125 = vrot.slane %v1875, 1
      %v2126 = vrot.slane %v1891, 1
      %v2127 = vsel %vm797, %v2125, %v2126
      %v2128 = vrot.slane %v1876, 1
      %v2129 = vrot.slane %v1892, 1
      %v2130 = vsel %vm797, %v2128, %v2129
      %v2131 = vrot.slane %v1877, 1
      %v2132 = vrot.slane %v1893, 1
      %v2133 = vsel %vm797, %v2131, %v2132
      %v2134 = vrot.slane %v1878, 1
      %v2135 = vrot.slane %v1894, 1
      %v2136 = vsel %vm797, %v2134, %v2135
      %v2137 = vrot.slane %v1879, 1
      %v2138 = vrot.slane %v1895, 1
      %v2139 = vsel %vm797, %v2137, %v2138
      %v2140 = vrot.slane %v1880, 1
      %v2141 = vrot.slane %v1896, 1
      %v2142 = vsel %vm797, %v2140, %v2141
      %v2143 = vrot.slane %v1881, 1
      %v2144 = vrot.slane %v1897, 1
      %v2145 = vsel %vm797, %v2143, %v2144
      %v2146 = vrot.slane %v1882, 1
      %v2147 = vrot.slane %v1898, 1
      %v2148 = vsel %vm797, %v2146, %v2147
      %v2149 = vrot.slane %v1883, 1
      %v2150 = vrot.slane %v1899, 1
      %v2151 = vsel %vm797, %v2149, %v2150
      %v2152 = vrot.slane %v1884, 1
      %v2153 = vrot.slane %v1900, 1
      %v2154 = vsel %vm797, %v2152, %v2153
      %v2155 = vrot.slane %v1885, 1
      %v2156 = vrot.slane %v1901, 1
      %v2157 = vsel %vm797, %v2155, %v2156
      %v2159 = vshrl.u32 %v1886, 16
      %v2161 = vshll.u32 %v1886, 16
      %v2163 = vrot.slane %v2161, 1
      %v2164 = vor.u32 %v2159, %v2163
      %v2166 = vshll.u32 %v1902, 16
      %v2168 = vrot.slane %v2166, 1
      %v2169 = vsel %vm572, %v2164, %v2168
      %v2172 = vrot.slane %v1886, 1
      %v2173 = vrot.slane %v1902, 1
      %v2174 = vsel %vm797, %v2172, %v2173
      %2175 = vrot.lane.b32.xlu0 %v584, 8
      %v2176 = vpop.permute.xlu0 %2175
      %2177 = vrot.lane.b32.xlu0 %v1914, 8
      %v2178 = vpop.permute.xlu0 %2177
      %2179 = vrot.lane.b32.xlu0 %v1926, 8
      %v2180 = vpop.permute.xlu0 %2179
      %2181 = vrot.lane.b32.xlu0 %v1938, 8
      %v2182 = vpop.permute.xlu0 %2181
      %2183 = vrot.lane.b32.xlu0 %v1950, 8
      %v2184 = vpop.permute.xlu0 %2183
      %2185 = vrot.lane.b32.xlu0 %v1962, 8
      %v2186 = vpop.permute.xlu0 %2185
      %2187 = vrot.lane.b32.xlu0 %v1974, 8
      %v2188 = vpop.permute.xlu0 %2187
      %2189 = vrot.lane.b32.xlu0 %v1986, 8
      %v2190 = vpop.permute.xlu0 %2189
      %2191 = vrot.lane.b32.xlu0 %v1998, 8
      %v2192 = vpop.permute.xlu0 %2191
      %2193 = vrot.lane.b32.xlu0 %v2010, 8
      %v2194 = vpop.permute.xlu0 %2193
      %2195 = vrot.lane.b32.xlu0 %v2022, 8
      %v2196 = vpop.permute.xlu0 %2195
      %2197 = vrot.lane.b32.xlu0 %v2034, 8
      %v2198 = vpop.permute.xlu0 %2197
      %2199 = vrot.lane.b32.xlu0 %v2046, 8
      %v2200 = vpop.permute.xlu0 %2199
      %2201 = vrot.lane.b32.xlu0 %v2058, 8
      %v2202 = vpop.permute.xlu0 %2201
      %2203 = vrot.lane.b32.xlu0 %v2070, 8
      %v2204 = vpop.permute.xlu0 %2203
      %2205 = vrot.lane.b32.xlu0 %v2082, 8
      %v2206 = vpop.permute.xlu0 %2205
      %2207 = vrot.lane.b32.xlu0 %v800, 16
      %v2208 = vpop.permute.xlu0 %2207
      %2209 = vrot.lane.b32.xlu0 %v2115, 16
      %v2210 = vpop.permute.xlu0 %2209
      %2211 = vrot.lane.b32.xlu0 %v2118, 16
      %v2212 = vpop.permute.xlu0 %2211
      %2213 = vrot.lane.b32.xlu0 %v2121, 16
      %v2214 = vpop.permute.xlu0 %2213
      %2215 = vrot.lane.b32.xlu0 %v2124, 16
      %v2216 = vpop.permute.xlu0 %2215
      %2217 = vrot.lane.b32.xlu0 %v2127, 16
      %v2218 = vpop.permute.xlu0 %2217
      %2219 = vrot.lane.b32.xlu0 %v2130, 16
      %v2220 = vpop.permute.xlu0 %2219
      %2221 = vrot.lane.b32.xlu0 %v2133, 16
      %v2222 = vpop.permute.xlu0 %2221
      %2223 = vrot.lane.b32.xlu0 %v2136, 16
      %v2224 = vpop.permute.xlu0 %2223
      %2225 = vrot.lane.b32.xlu0 %v2139, 16
      %v2226 = vpop.permute.xlu0 %2225
      %2227 = vrot.lane.b32.xlu0 %v2142, 16
      %v2228 = vpop.permute.xlu0 %2227
      %2229 = vrot.lane.b32.xlu0 %v2145, 16
      %v2230 = vpop.permute.xlu0 %2229
      %2231 = vrot.lane.b32.xlu0 %v2148, 16
      %v2232 = vpop.permute.xlu0 %2231
      %2233 = vrot.lane.b32.xlu0 %v2151, 16
      %v2234 = vpop.permute.xlu0 %2233
      %2235 = vrot.lane.b32.xlu0 %v2154, 16
      %v2236 = vpop.permute.xlu0 %2235
      %2237 = vrot.lane.b32.xlu0 %v2157, 16
      %v2238 = vpop.permute.xlu0 %2237
      %2239 = vrot.lane.b32.xlu0 %v1871, 24
      %v2240 = vpop.permute.xlu0 %2239
      %2241 = vrot.lane.b32.xlu0 %v1872, 24
      %v2242 = vpop.permute.xlu0 %2241
      %2243 = vrot.lane.b32.xlu0 %v1873, 24
      %v2244 = vpop.permute.xlu0 %2243
      %2245 = vrot.lane.b32.xlu0 %v1874, 24
      %v2246 = vpop.permute.xlu0 %2245
      %2247 = vrot.lane.b32.xlu0 %v1875, 24
      %v2248 = vpop.permute.xlu0 %2247
      %2249 = vrot.lane.b32.xlu0 %v1876, 24
      %v2250 = vpop.permute.xlu0 %2249
      %2251 = vrot.lane.b32.xlu0 %v1877, 24
      %v2252 = vpop.permute.xlu0 %2251
      %2253 = vrot.lane.b32.xlu0 %v1878, 24
      %v2254 = vpop.permute.xlu0 %2253
      %2255 = vrot.lane.b32.xlu0 %v1879, 24
      %v2256 = vpop.permute.xlu0 %2255
      %2257 = vrot.lane.b32.xlu0 %v1880, 24
      %v2258 = vpop.permute.xlu0 %2257
      %2259 = vrot.lane.b32.xlu0 %v1881, 24
      %v2260 = vpop.permute.xlu0 %2259
      %2261 = vrot.lane.b32.xlu0 %v1882, 24
      %v2262 = vpop.permute.xlu0 %2261
      %2263 = vrot.lane.b32.xlu0 %v1883, 24
      %v2264 = vpop.permute.xlu0 %2263
      %2265 = vrot.lane.b32.xlu0 %v1884, 24
      %v2266 = vpop.permute.xlu0 %2265
      %2267 = vrot.lane.b32.xlu0 %v1885, 24
      %v2268 = vpop.permute.xlu0 %2267
      %2269 = vrot.lane.b32.xlu0 %v1886, 24
      %v2270 = vpop.permute.xlu0 %2269
      %2271 = vrot.lane.b32.xlu0 %v1914, 32
      %v2272 = vpop.permute.xlu0 %2271
      %2273 = vrot.lane.b32.xlu0 %v1926, 32
      %v2274 = vpop.permute.xlu0 %2273
      %2275 = vrot.lane.b32.xlu0 %v1938, 32
      %v2276 = vpop.permute.xlu0 %2275
      %2277 = vrot.lane.b32.xlu0 %v1950, 32
      %v2278 = vpop.permute.xlu0 %2277
      %2279 = vrot.lane.b32.xlu0 %v1962, 32
      %v2280 = vpop.permute.xlu0 %2279
      %2281 = vrot.lane.b32.xlu0 %v1974, 32
      %v2282 = vpop.permute.xlu0 %2281
      %2283 = vrot.lane.b32.xlu0 %v1986, 32
      %v2284 = vpop.permute.xlu0 %2283
      %2285 = vrot.lane.b32.xlu0 %v1998, 32
      %v2286 = vpop.permute.xlu0 %2285
      %2287 = vrot.lane.b32.xlu0 %v2010, 32
      %v2288 = vpop.permute.xlu0 %2287
      %2289 = vrot.lane.b32.xlu0 %v2022, 32
      %v2290 = vpop.permute.xlu0 %2289
      %2291 = vrot.lane.b32.xlu0 %v2034, 32
      %v2292 = vpop.permute.xlu0 %2291
      %2293 = vrot.lane.b32.xlu0 %v2046, 32
      %v2294 = vpop.permute.xlu0 %2293
      %2295 = vrot.lane.b32.xlu0 %v2058, 32
      %v2296 = vpop.permute.xlu0 %2295
      %2297 = vrot.lane.b32.xlu0 %v2070, 32
      %v2298 = vpop.permute.xlu0 %2297
      %2299 = vrot.lane.b32.xlu0 %v2082, 32
      %v2300 = vpop.permute.xlu0 %2299
      %2301 = vrot.lane.b32.xlu0 %v2169, 32
      %v2302 = vpop.permute.xlu0 %2301
      %2303 = vrot.lane.b32.xlu0 %v2115, 40
      %v2304 = vpop.permute.xlu0 %2303
      %2305 = vrot.lane.b32.xlu0 %v2118, 40
      %v2306 = vpop.permute.xlu0 %2305
      %2307 = vrot.lane.b32.xlu0 %v2121, 40
      %v2308 = vpop.permute.xlu0 %2307
      %2309 = vrot.lane.b32.xlu0 %v2124, 40
      %v2310 = vpop.permute.xlu0 %2309
      %2311 = vrot.lane.b32.xlu0 %v2127, 40
      %v2312 = vpop.permute.xlu0 %2311
      %2313 = vrot.lane.b32.xlu0 %v2130, 40
      %v2314 = vpop.permute.xlu0 %2313
      %2315 = vrot.lane.b32.xlu0 %v2133, 40
      %v2316 = vpop.permute.xlu0 %2315
      %2317 = vrot.lane.b32.xlu0 %v2136, 40
      %v2318 = vpop.permute.xlu0 %2317
      %2319 = vrot.lane.b32.xlu0 %v2139, 40
      %v2320 = vpop.permute.xlu0 %2319
      %2321 = vrot.lane.b32.xlu0 %v2142, 40
      %v2322 = vpop.permute.xlu0 %2321
      %2323 = vrot.lane.b32.xlu0 %v2145, 40
      %v2324 = vpop.permute.xlu0 %2323
      %2325 = vrot.lane.b32.xlu0 %v2148, 40
      %v2326 = vpop.permute.xlu0 %2325
      %2327 = vrot.lane.b32.xlu0 %v2151, 40
      %v2328 = vpop.permute.xlu0 %2327
      %2329 = vrot.lane.b32.xlu0 %v2154, 40
      %v2330 = vpop.permute.xlu0 %2329
      %2331 = vrot.lane.b32.xlu0 %v2157, 40
      %v2332 = vpop.permute.xlu0 %2331
      %2333 = vrot.lane.b32.xlu0 %v2174, 40
      %v2334 = vpop.permute.xlu0 %2333
      %2335 = vrot.lane.b32.xlu0 %v1872, 48
      %v2336 = vpop.permute.xlu0 %2335
      %2337 = vrot.lane.b32.xlu0 %v1873, 48
      %v2338 = vpop.permute.xlu0 %2337
      %2339 = vrot.lane.b32.xlu0 %v1874, 48
      %v2340 = vpop.permute.xlu0 %2339
      %2341 = vrot.lane.b32.xlu0 %v1875, 48
      %v2342 = vpop.permute.xlu0 %2341
      %2343 = vrot.lane.b32.xlu0 %v1876, 48
      %v2344 = vpop.permute.xlu0 %2343
      %2345 = vrot.lane.b32.xlu0 %v1877, 48
      %v2346 = vpop.permute.xlu0 %2345
      %2347 = vrot.lane.b32.xlu0 %v1878, 48
      %v2348 = vpop.permute.xlu0 %2347
      %2349 = vrot.lane.b32.xlu0 %v1879, 48
      %v2350 = vpop.permute.xlu0 %2349
      %2351 = vrot.lane.b32.xlu0 %v1880, 48
      %v2352 = vpop.permute.xlu0 %2351
      %2353 = vrot.lane.b32.xlu0 %v1881, 48
      %v2354 = vpop.permute.xlu0 %2353
      %2355 = vrot.lane.b32.xlu0 %v1882, 48
      %v2356 = vpop.permute.xlu0 %2355
      %2357 = vrot.lane.b32.xlu0 %v1883, 48
      %v2358 = vpop.permute.xlu0 %2357
      %2359 = vrot.lane.b32.xlu0 %v1884, 48
      %v2360 = vpop.permute.xlu0 %2359
      %2361 = vrot.lane.b32.xlu0 %v1885, 48
      %v2362 = vpop.permute.xlu0 %2361
      %2363 = vrot.lane.b32.xlu0 %v1886, 48
      %v2364 = vpop.permute.xlu0 %2363
      %2365 = vrot.lane.b32.xlu0 %v538, 48
      %v2366 = vpop.permute.xlu0 %2365
      %2367 = vrot.lane.b32.xlu0 %v1926, 56
      %v2368 = vpop.permute.xlu0 %2367
      %2369 = vrot.lane.b32.xlu0 %v1938, 56
      %v2370 = vpop.permute.xlu0 %2369
      %2371 = vrot.lane.b32.xlu0 %v1950, 56
      %v2372 = vpop.permute.xlu0 %2371
      %2373 = vrot.lane.b32.xlu0 %v1962, 56
      %v2374 = vpop.permute.xlu0 %2373
      %2375 = vrot.lane.b32.xlu0 %v1974, 56
      %v2376 = vpop.permute.xlu0 %2375
      %2377 = vrot.lane.b32.xlu0 %v1986, 56
      %v2378 = vpop.permute.xlu0 %2377
      %2379 = vrot.lane.b32.xlu0 %v1998, 56
      %v2380 = vpop.permute.xlu0 %2379
      %2381 = vrot.lane.b32.xlu0 %v2010, 56
      %v2382 = vpop.permute.xlu0 %2381
      %2383 = vrot.lane.b32.xlu0 %v2022, 56
      %v2384 = vpop.permute.xlu0 %2383
      %2385 = vrot.lane.b32.xlu0 %v2034, 56
      %v2386 = vpop.permute.xlu0 %2385
      %2387 = vrot.lane.b32.xlu0 %v2046, 56
      %v2388 = vpop.permute.xlu0 %2387
      %2389 = vrot.lane.b32.xlu0 %v2058, 56
      %v2390 = vpop.permute.xlu0 %2389
      %2391 = vrot.lane.b32.xlu0 %v2070, 56
      %v2392 = vpop.permute.xlu0 %2391
      %2393 = vrot.lane.b32.xlu0 %v2082, 56
      %v2394 = vpop.permute.xlu0 %2393
      %2395 = vrot.lane.b32.xlu0 %v2169, 56
      %v2396 = vpop.permute.xlu0 %2395
      %2397 = vrot.lane.b32.xlu0 %v584, 56
      %v2398 = vpop.permute.xlu0 %2397
      %2399 = vrot.lane.b32.xlu0 %v2118, 64
      %v2400 = vpop.permute.xlu0 %2399
      %2401 = vrot.lane.b32.xlu0 %v2121, 64
      %v2402 = vpop.permute.xlu0 %2401
      %2403 = vrot.lane.b32.xlu0 %v2124, 64
      %v2404 = vpop.permute.xlu0 %2403
      %2405 = vrot.lane.b32.xlu0 %v2127, 64
      %v2406 = vpop.permute.xlu0 %2405
      %2407 = vrot.lane.b32.xlu0 %v2130, 64
      %v2408 = vpop.permute.xlu0 %2407
      %2409 = vrot.lane.b32.xlu0 %v2133, 64
      %v2410 = vpop.permute.xlu0 %2409
      %2411 = vrot.lane.b32.xlu0 %v2136, 64
      %v2412 = vpop.permute.xlu0 %2411
      %2413 = vrot.lane.b32.xlu0 %v2139, 64
      %v2414 = vpop.permute.xlu0 %2413
      %2415 = vrot.lane.b32.xlu0 %v2142, 64
      %v2416 = vpop.permute.xlu0 %2415
      %2417 = vrot.lane.b32.xlu0 %v2145, 64
      %v2418 = vpop.permute.xlu0 %2417
      %2419 = vrot.lane.b32.xlu0 %v2148, 64
      %v2420 = vpop.permute.xlu0 %2419
      %2421 = vrot.lane.b32.xlu0 %v2151, 64
      %v2422 = vpop.permute.xlu0 %2421
      %2423 = vrot.lane.b32.xlu0 %v2154, 64
      %v2424 = vpop.permute.xlu0 %2423
      %2425 = vrot.lane.b32.xlu0 %v2157, 64
      %v2426 = vpop.permute.xlu0 %2425
      %2427 = vrot.lane.b32.xlu0 %v2174, 64
      %v2428 = vpop.permute.xlu0 %2427
      %2429 = vrot.lane.b32.xlu0 %v800, 64
      %v2430 = vpop.permute.xlu0 %2429
      %v2432 = vsel %vm1152, %v538, %v2176
      %v2434 = vsel %vm1152, %v1871, %v2178
      %v2436 = vsel %vm1152, %v1872, %v2180
      %v2438 = vsel %vm1152, %v1873, %v2182
      %v2440 = vsel %vm1152, %v1874, %v2184
      %v2442 = vsel %vm1152, %v1875, %v2186
      %v2444 = vsel %vm1152, %v1876, %v2188
      %v2446 = vsel %vm1152, %v1877, %v2190
      %v2448 = vsel %vm1152, %v1878, %v2192
      %v2450 = vsel %vm1152, %v1879, %v2194
      %v2452 = vsel %vm1152, %v1880, %v2196
      %v2454 = vsel %vm1152, %v1881, %v2198
      %v2456 = vsel %vm1152, %v1882, %v2200
      %v2458 = vsel %vm1152, %v1883, %v2202
      %v2460 = vsel %vm1152, %v1884, %v2204
      %v2462 = vsel %vm1152, %v1885, %v2206
      %v2464 = vsel %vm1218, %v2432, %v2208
      %v2466 = vsel %vm1218, %v2434, %v2210
      %v2468 = vsel %vm1218, %v2436, %v2212
      %v2470 = vsel %vm1218, %v2438, %v2214
      %v2472 = vsel %vm1218, %v2440, %v2216
      %v2474 = vsel %vm1218, %v2442, %v2218
      %v2476 = vsel %vm1218, %v2444, %v2220
      %v2478 = vsel %vm1218, %v2446, %v2222
      %v2480 = vsel %vm1218, %v2448, %v2224
      %v2482 = vsel %vm1218, %v2450, %v2226
      %v2484 = vsel %vm1218, %v2452, %v2228
      %v2486 = vsel %vm1218, %v2454, %v2230
      %v2488 = vsel %vm1218, %v2456, %v2232
      %v2490 = vsel %vm1218, %v2458, %v2234
      %v2492 = vsel %vm1218, %v2460, %v2236
      %v2494 = vsel %vm1218, %v2462, %v2238
      %v2496 = vsel %vm1284, %v2464, %v2240
      %v2498 = vsel %vm1284, %v2466, %v2242
      %v2500 = vsel %vm1284, %v2468, %v2244
      %v2502 = vsel %vm1284, %v2470, %v2246
      %v2504 = vsel %vm1284, %v2472, %v2248
      %v2506 = vsel %vm1284, %v2474, %v2250
      %v2508 = vsel %vm1284, %v2476, %v2252
      %v2510 = vsel %vm1284, %v2478, %v2254
      %v2512 = vsel %vm1284, %v2480, %v2256
      %v2514 = vsel %vm1284, %v2482, %v2258
      %v2516 = vsel %vm1284, %v2484, %v2260
      %v2518 = vsel %vm1284, %v2486, %v2262
      %v2520 = vsel %vm1284, %v2488, %v2264
      %v2522 = vsel %vm1284, %v2490, %v2266
      %v2524 = vsel %vm1284, %v2492, %v2268
      %v2526 = vsel %vm1284, %v2494, %v2270
      %v2528 = vsel %vm1350, %v2496, %v2272
      %v2530 = vsel %vm1350, %v2498, %v2274
      %v2532 = vsel %vm1350, %v2500, %v2276
      %v2534 = vsel %vm1350, %v2502, %v2278
      %v2536 = vsel %vm1350, %v2504, %v2280
      %v2538 = vsel %vm1350, %v2506, %v2282
      %v2540 = vsel %vm1350, %v2508, %v2284
      %v2542 = vsel %vm1350, %v2510, %v2286
      %v2544 = vsel %vm1350, %v2512, %v2288
      %v2546 = vsel %vm1350, %v2514, %v2290
      %v2548 = vsel %vm1350, %v2516, %v2292
      %v2550 = vsel %vm1350, %v2518, %v2294
      %v2552 = vsel %vm1350, %v2520, %v2296
      %v2554 = vsel %vm1350, %v2522, %v2298
      %v2556 = vsel %vm1350, %v2524, %v2300
      %v2558 = vsel %vm1350, %v2526, %v2302
      %vm2559 = vcmask 326656
      %v2561 = vsel %vm2559, %v2528, %v2304
      %v2563 = vsel %vm2559, %v2530, %v2306
      %v2565 = vsel %vm2559, %v2532, %v2308
      %v2567 = vsel %vm2559, %v2534, %v2310
      %v2569 = vsel %vm2559, %v2536, %v2312
      %v2571 = vsel %vm2559, %v2538, %v2314
      %v2573 = vsel %vm2559, %v2540, %v2316
      %v2575 = vsel %vm2559, %v2542, %v2318
      %v2577 = vsel %vm2559, %v2544, %v2320
      %v2579 = vsel %vm2559, %v2546, %v2322
      %v2581 = vsel %vm2559, %v2548, %v2324
      %v2583 = vsel %vm2559, %v2550, %v2326
      %v2585 = vsel %vm2559, %v2552, %v2328
      %v2587 = vsel %vm2559, %v2554, %v2330
      %v2589 = vsel %vm2559, %v2556, %v2332
      %v2591 = vsel %vm2559, %v2558, %v2334
      %vm2592 = vcmask 392192
      %v2594 = vsel %vm2592, %v2561, %v2336
      %v2596 = vsel %vm2592, %v2563, %v2338
      %v2598 = vsel %vm2592, %v2565, %v2340
      %v2600 = vsel %vm2592, %v2567, %v2342
      %v2602 = vsel %vm2592, %v2569, %v2344
      %v2604 = vsel %vm2592, %v2571, %v2346
      %v2606 = vsel %vm2592, %v2573, %v2348
      %v2608 = vsel %vm2592, %v2575, %v2350
      %v2610 = vsel %vm2592, %v2577, %v2352
      %v2612 = vsel %vm2592, %v2579, %v2354
      %v2614 = vsel %vm2592, %v2581, %v2356
      %v2616 = vsel %vm2592, %v2583, %v2358
      %v2618 = vsel %vm2592, %v2585, %v2360
      %v2620 = vsel %vm2592, %v2587, %v2362
      %v2622 = vsel %vm2592, %v2589, %v2364
      %v2624 = vsel %vm2592, %v2591, %v2366
      %vm2625 = vcmask 457728
      %v2627 = vsel %vm2625, %v2594, %v2368
      %v2629 = vsel %vm2625, %v2596, %v2370
      %v2631 = vsel %vm2625, %v2598, %v2372
      %v2633 = vsel %vm2625, %v2600, %v2374
      %v2635 = vsel %vm2625, %v2602, %v2376
      %v2637 = vsel %vm2625, %v2604, %v2378
      %v2639 = vsel %vm2625, %v2606, %v2380
      %v2641 = vsel %vm2625, %v2608, %v2382
      %v2643 = vsel %vm2625, %v2610, %v2384
      %v2645 = vsel %vm2625, %v2612, %v2386
      %v2647 = vsel %vm2625, %v2614, %v2388
      %v2649 = vsel %vm2625, %v2616, %v2390
      %v2651 = vsel %vm2625, %v2618, %v2392
      %v2653 = vsel %vm2625, %v2620, %v2394
      %v2655 = vsel %vm2625, %v2622, %v2396
      %v2657 = vsel %vm2625, %v2624, %v2398
      %vm2658 = vcmask 523264
      %v2660 = vsel %vm2658, %v2627, %v2400
      %v2662 = vsel %vm2658, %v2629, %v2402
      %v2664 = vsel %vm2658, %v2631, %v2404
      %v2666 = vsel %vm2658, %v2633, %v2406
      %v2668 = vsel %vm2658, %v2635, %v2408
      %v2670 = vsel %vm2658, %v2637, %v2410
      %v2672 = vsel %vm2658, %v2639, %v2412
      %v2674 = vsel %vm2658, %v2641, %v2414
      %v2676 = vsel %vm2658, %v2643, %v2416
      %v2678 = vsel %vm2658, %v2645, %v2418
      %v2680 = vsel %vm2658, %v2647, %v2420
      %v2682 = vsel %vm2658, %v2649, %v2422
      %v2684 = vsel %vm2658, %v2651, %v2424
      %v2686 = vsel %vm2658, %v2653, %v2426
      %v2688 = vsel %vm2658, %v2655, %v2428
      %v2690 = vsel %vm2658, %v2657, %v2430
      %v2691 = vld [vmem:[%s4] sm:$0xf]
      %v2692 = vld [vmem:[%s4 + $0x4] sm:$0xf]
      %v2693 = vld [vmem:[%s4 + $0x8] sm:$0xf]
      %v2694 = vld [vmem:[%s4 + $0xc] sm:$0xf]
      %v2695 = vld [vmem:[%s4 + $0x10] sm:$0xf]
      %v2696 = vld [vmem:[%s4 + $0x14] sm:$0xf]
      %v2697 = vld [vmem:[%s4 + $0x18] sm:$0xf]
      %v2698 = vld [vmem:[%s4 + $0x1c] sm:$0xf]
      %v2699 = vld [vmem:[%s4 + $0x20] sm:$0xf]
      %v2709 = vunpack.c.l.b16 %v2691
      %v2710 = vunpack.c.l.b16 %v2692
      %v2711 = vunpack.c.l.b16 %v2693
      %v2712 = vunpack.c.l.b16 %v2694
      %v2713 = vunpack.c.l.b16 %v2695
      %v2714 = vunpack.c.l.b16 %v2696
      %v2715 = vunpack.c.l.b16 %v2697
      %v2716 = vunpack.c.l.b16 %v2698
      %v2717 = vunpack.c.l.b16 %v2699
      %v2718 = vpack.c.b16 %v2710, %v2709
      %v2719 = vpack.c.b16 %v2712, %v2711
      %v2720 = vpack.c.b16 %v2714, %v2713
      %v2721 = vpack.c.b16 %v2716, %v2715
      %v2722 = vpack.c.b16 %v2717, %v2717
      %vm2727 = vcmask 588800
      %v2728 = vsel %vm2727, %v2660, 0
      %v2730 = vsel %vm2727, %v2662, 0
      %v2732 = vsel %vm2727, %v2664, 0
      %v2734 = vsel %vm2727, %v2666, 0
      %v2736 = vsel %vm2727, %v2668, 0
      %v2738 = vsel %vm2727, %v2670, 0
      %v2740 = vsel %vm2727, %v2672, 0
      %v2742 = vsel %vm2727, %v2674, 0
      %v2744 = vsel %vm2727, %v2676, 0
      %v2746 = vsel %vm2727, %v2678, 0
      %v2748 = vsel %vm2727, %v2680, 0
      %v2750 = vsel %vm2727, %v2682, 0
      %v2752 = vsel %vm2727, %v2684, 0
      %v2754 = vsel %vm2727, %v2686, 0
      %v2756 = vsel %vm2727, %v2688, 0
      %v2758 = vsel %vm2727, %v2690, 0
      %vm2760 = vcmask 1043456
      %v2762 = vsel %vm2760, %v2722, 0
      %2764 = vmatprep.subr.bf16.mxu0 0
      %2765 = vmatpush1.bf16.msra.mxu0 0
      %2766 = vmatprep.subr.bf16.mxu0 0
      %2767 = vmatpush1.bf16.msra.mxu0 0
      %2768 = vmatprep.subr.bf16.mxu0 0
      %2769 = vmatpush1.bf16.msra.mxu0 0
      %2770 = vmatprep.subr.bf16.mxu0 0
      %2771 = vmatpush1.bf16.msra.mxu0 %v2762
      %2772 = vmatprep.subr.bf16.mxu0 0
      %2773 = vmatpush1.bf16.msra.mxu0 %v2721
      %2774 = vmatprep.subr.bf16.mxu0 0
      %2775 = vmatpush1.bf16.msra.mxu0 %v2720
      %2776 = vmatprep.subr.bf16.mxu0 0
      %2777 = vmatpush1.bf16.msra.mxu0 %v2719
      %2778 = vmatprep.subr.bf16.mxu0 0
      %2779 = vmatpush1.bf16.msra.mxu0 %v2718
      %2780 = vmatprep.subr.bf16.mxu0 0
      %2781 = vmatpush2.bf16.msra.mxu0 0
      %2782 = vmatprep.subr.bf16.mxu0 0
      %2783 = vmatpush2.bf16.msra.mxu0 0
      %2784 = vmatprep.subr.bf16.mxu0 0
      %2785 = vmatpush2.bf16.msra.mxu0 0
      %2786 = vmatprep.subr.bf16.mxu0 0
      %2787 = vmatpush2.bf16.msra.mxu0 0
      %2788 = vmatprep.subr.bf16.mxu0 0
      %2789 = vmatpush2.bf16.msra.mxu0 0
      %2790 = vmatprep.subr.bf16.mxu0 0
      %2791 = vmatpush2.bf16.msra.mxu0 0
      %2792 = vmatprep.subr.bf16.mxu0 0
      %2793 = vmatpush2.bf16.msra.mxu0 0
      %2794 = vmatprep.subr.bf16.mxu0 0
      %2795 = vmatpush2.bf16.msra.mxu0 0
      %2796 = vmatprep.mubr.bf16.mxu0 0
      %2797 = vmatmul.mubr.bf16.gmra.mxu0 %v2728
      %v2798 = vpop.f32.mrf.mxu0
      %v2799 = vadd.f32 0.0, %v2798
      %v2800 = vpop.f32.mrf.mxu0
      %v2801 = vpop.f32.mrf.mxu0
      %v2802 = vadd.f32 0.0, %v2801
      %v2803 = vpop.f32.mrf.mxu0
      %2804 = vmatprep.mubr.bf16.mxu0 0
      %2805 = vmatmul.mubr.bf16.gmra.mxu0 %v2730
      %v2806 = vpop.f32.mrf.mxu0
      %v2807 = vadd.f32 0.0, %v2806
      %v2808 = vpop.f32.mrf.mxu0
      %v2809 = vpop.f32.mrf.mxu0
      %v2810 = vadd.f32 0.0, %v2809
      %v2811 = vpop.f32.mrf.mxu0
      %2812 = vmatprep.mubr.bf16.mxu0 0
      %2813 = vmatmul.mubr.bf16.gmra.mxu0 %v2732
      %v2814 = vpop.f32.mrf.mxu0
      %v2815 = vadd.f32 0.0, %v2814
      %v2816 = vpop.f32.mrf.mxu0
      %v2817 = vpop.f32.mrf.mxu0
      %v2818 = vadd.f32 0.0, %v2817
      %v2819 = vpop.f32.mrf.mxu0
      %2820 = vmatprep.mubr.bf16.mxu0 0
      %2821 = vmatmul.mubr.bf16.gmra.mxu0 %v2734
      %v2822 = vpop.f32.mrf.mxu0
      %v2823 = vadd.f32 0.0, %v2822
      %v2824 = vpop.f32.mrf.mxu0
      %v2825 = vpop.f32.mrf.mxu0
      %v2826 = vadd.f32 0.0, %v2825
      %v2827 = vpop.f32.mrf.mxu0
      %2828 = vmatprep.mubr.bf16.mxu0 0
      %2829 = vmatmul.mubr.bf16.gmra.mxu0 %v2736
      %v2830 = vpop.f32.mrf.mxu0
      %v2831 = vadd.f32 0.0, %v2830
      %v2832 = vpop.f32.mrf.mxu0
      %v2833 = vpop.f32.mrf.mxu0
      %v2834 = vadd.f32 0.0, %v2833
      %v2835 = vpop.f32.mrf.mxu0
      %2836 = vmatprep.mubr.bf16.mxu0 0
      %2837 = vmatmul.mubr.bf16.gmra.mxu0 %v2738
      %v2838 = vpop.f32.mrf.mxu0
      %v2839 = vadd.f32 0.0, %v2838
      %v2840 = vpop.f32.mrf.mxu0
      %v2841 = vpop.f32.mrf.mxu0
      %v2842 = vadd.f32 0.0, %v2841
      %v2843 = vpop.f32.mrf.mxu0
      %2844 = vmatprep.mubr.bf16.mxu0 0
      %2845 = vmatmul.mubr.bf16.gmra.mxu0 %v2740
      %v2846 = vpop.f32.mrf.mxu0
      %v2847 = vadd.f32 0.0, %v2846
      %v2848 = vpop.f32.mrf.mxu0
      %v2849 = vpop.f32.mrf.mxu0
      %v2850 = vadd.f32 0.0, %v2849
      %v2851 = vpop.f32.mrf.mxu0
      %2852 = vmatprep.mubr.bf16.mxu0 0
      %2853 = vmatmul.mubr.bf16.gmra.mxu0 %v2742
      %v2854 = vpop.f32.mrf.mxu0
      %v2855 = vadd.f32 0.0, %v2854
      %v2856 = vpop.f32.mrf.mxu0
      %v2857 = vpop.f32.mrf.mxu0
      %v2858 = vadd.f32 0.0, %v2857
      %v2859 = vpop.f32.mrf.mxu0
      %2860 = vmatprep.mubr.bf16.mxu0 0
      %2861 = vmatmul.mubr.bf16.gmra.mxu0 %v2744
      %v2862 = vpop.f32.mrf.mxu0
      %v2863 = vadd.f32 0.0, %v2862
      %v2864 = vpop.f32.mrf.mxu0
      %v2865 = vpop.f32.mrf.mxu0
      %v2866 = vadd.f32 0.0, %v2865
      %v2867 = vpop.f32.mrf.mxu0
      %2868 = vmatprep.mubr.bf16.mxu0 0
      %2869 = vmatmul.mubr.bf16.gmra.mxu0 %v2746
      %v2870 = vpop.f32.mrf.mxu0
      %v2871 = vadd.f32 0.0, %v2870
      %v2872 = vpop.f32.mrf.mxu0
      %v2873 = vpop.f32.mrf.mxu0
      %v2874 = vadd.f32 0.0, %v2873
      %v2875 = vpop.f32.mrf.mxu0
      %2876 = vmatprep.mubr.bf16.mxu0 0
      %2877 = vmatmul.mubr.bf16.gmra.mxu0 %v2748
      %v2878 = vpop.f32.mrf.mxu0
      %v2879 = vadd.f32 0.0, %v2878
      %v2880 = vpop.f32.mrf.mxu0
      %v2881 = vpop.f32.mrf.mxu0
      %v2882 = vadd.f32 0.0, %v2881
      %v2883 = vpop.f32.mrf.mxu0
      %2884 = vmatprep.mubr.bf16.mxu0 0
      %2885 = vmatmul.mubr.bf16.gmra.mxu0 %v2750
      %v2886 = vpop.f32.mrf.mxu0
      %v2887 = vadd.f32 0.0, %v2886
      %v2888 = vpop.f32.mrf.mxu0
      %v2889 = vpop.f32.mrf.mxu0
      %v2890 = vadd.f32 0.0, %v2889
      %v2891 = vpop.f32.mrf.mxu0
      %2892 = vmatprep.mubr.bf16.mxu0 0
      %2893 = vmatmul.mubr.bf16.gmra.mxu0 %v2752
      %v2894 = vpop.f32.mrf.mxu0
      %v2895 = vadd.f32 0.0, %v2894
      %v2896 = vpop.f32.mrf.mxu0
      %v2897 = vpop.f32.mrf.mxu0
      %v2898 = vadd.f32 0.0, %v2897
      %v2899 = vpop.f32.mrf.mxu0
      %2900 = vmatprep.mubr.bf16.mxu0 0
      %2901 = vmatmul.mubr.bf16.gmra.mxu0 %v2754
      %v2902 = vpop.f32.mrf.mxu0
      %v2903 = vadd.f32 0.0, %v2902
      %v2904 = vpop.f32.mrf.mxu0
      %v2905 = vpop.f32.mrf.mxu0
      %v2906 = vadd.f32 0.0, %v2905
      %v2907 = vpop.f32.mrf.mxu0
      %2908 = vmatprep.mubr.bf16.mxu0 0
      %2909 = vmatmul.mubr.bf16.gmra.mxu0 %v2756
      %v2910 = vpop.f32.mrf.mxu0
      %v2911 = vadd.f32 0.0, %v2910
      %v2912 = vpop.f32.mrf.mxu0
      %v2913 = vpop.f32.mrf.mxu0
      %v2914 = vadd.f32 0.0, %v2913
      %v2915 = vpop.f32.mrf.mxu0
      %2916 = vmatprep.mubr.bf16.mxu0 0
      %2917 = vmatmul.mubr.bf16.gmra.mxu0 %v2758
      %v2918 = vpop.f32.mrf.mxu0
      %v2919 = vadd.f32 0.0, %v2918
      %v2920 = vpop.f32.mrf.mxu0
      %v2921 = vpop.f32.mrf.mxu0
      %v2922 = vadd.f32 0.0, %v2921
      %v2923 = vpop.f32.mrf.mxu0
      %2924 = vdwg.mxu0
      %v2925 = vld [vmem:[%s5] sm:$0x1]
      %v2927 = vlaneseq
      %v2928 = vshrl.u32 %v2927, 7
      %v2929 = vsub.s32 0, %v2928
      %v2930 = vrot.slane %v2925, %v2929
      %v2932 = vmul.f32 %v2799, %v2930
      %v2933 = vmul.f32 %v2802, %v2930
      %v2934 = vmul.f32 %v2807, %v2930
      %v2935 = vmul.f32 %v2810, %v2930
      %v2936 = vmul.f32 %v2815, %v2930
      %v2937 = vmul.f32 %v2818, %v2930
      %v2938 = vmul.f32 %v2823, %v2930
      %v2939 = vmul.f32 %v2826, %v2930
      %v2940 = vmul.f32 %v2831, %v2930
      %v2941 = vmul.f32 %v2834, %v2930
      %v2942 = vmul.f32 %v2839, %v2930
      %v2943 = vmul.f32 %v2842, %v2930
      %v2944 = vmul.f32 %v2847, %v2930
      %v2945 = vmul.f32 %v2850, %v2930
      %v2946 = vmul.f32 %v2855, %v2930
      %v2947 = vmul.f32 %v2858, %v2930
      %v2948 = vmul.f32 %v2863, %v2930
      %v2949 = vmul.f32 %v2866, %v2930
      %v2950 = vmul.f32 %v2871, %v2930
      %v2951 = vmul.f32 %v2874, %v2930
      %v2952 = vmul.f32 %v2879, %v2930
      %v2953 = vmul.f32 %v2882, %v2930
      %v2954 = vmul.f32 %v2887, %v2930
      %v2955 = vmul.f32 %v2890, %v2930
      %v2956 = vmul.f32 %v2895, %v2930
      %v2957 = vmul.f32 %v2898, %v2930
      %v2958 = vmul.f32 %v2903, %v2930
      %v2959 = vmul.f32 %v2906, %v2930
      %v2960 = vmul.f32 %v2911, %v2930
      %v2961 = vmul.f32 %v2914, %v2930
      %v2962 = vmul.f32 %v2919, %v2930
      %v2963 = vmul.f32 %v2922, %v2930
      %v2964 = vld [vmem:[%s6] sm:$0x1]
      %v2966 = vlaneseq
      %v2967 = vshrl.u32 %v2966, 7
      %v2968 = vsub.s32 0, %v2967
      %v2969 = vrot.slane %v2964, %v2968
      %v2971 = vadd.f32 %v2932, %v2969
      %v2972 = vadd.f32 %v2933, %v2969
      %v2973 = vadd.f32 %v2934, %v2969
      %v2974 = vadd.f32 %v2935, %v2969
      %v2975 = vadd.f32 %v2936, %v2969
      %v2976 = vadd.f32 %v2937, %v2969
      %v2977 = vadd.f32 %v2938, %v2969
      %v2978 = vadd.f32 %v2939, %v2969
      %v2979 = vadd.f32 %v2940, %v2969
      %v2980 = vadd.f32 %v2941, %v2969
      %v2981 = vadd.f32 %v2942, %v2969
      %v2982 = vadd.f32 %v2943, %v2969
      %v2983 = vadd.f32 %v2944, %v2969
      %v2984 = vadd.f32 %v2945, %v2969
      %v2985 = vadd.f32 %v2946, %v2969
      %v2986 = vadd.f32 %v2947, %v2969
      %v2987 = vadd.f32 %v2948, %v2969
      %v2988 = vadd.f32 %v2949, %v2969
      %v2989 = vadd.f32 %v2950, %v2969
      %v2990 = vadd.f32 %v2951, %v2969
      %v2991 = vadd.f32 %v2952, %v2969
      %v2992 = vadd.f32 %v2953, %v2969
      %v2993 = vadd.f32 %v2954, %v2969
      %v2994 = vadd.f32 %v2955, %v2969
      %v2995 = vadd.f32 %v2956, %v2969
      %v2996 = vadd.f32 %v2957, %v2969
      %v2997 = vadd.f32 %v2958, %v2969
      %v2998 = vadd.f32 %v2959, %v2969
      %v2999 = vadd.f32 %v2960, %v2969
      %v3000 = vadd.f32 %v2961, %v2969
      %v3001 = vadd.f32 %v2962, %v2969
      %v3002 = vadd.f32 %v2963, %v2969
      %v3003 = vmax.f32 %v2971, 0.0
      %v3004 = vmax.f32 %v2972, 0.0
      %v3005 = vmax.f32 %v2973, 0.0
      %v3006 = vmax.f32 %v2974, 0.0
      %v3007 = vmax.f32 %v2975, 0.0
      %v3008 = vmax.f32 %v2976, 0.0
      %v3009 = vmax.f32 %v2977, 0.0
      %v3010 = vmax.f32 %v2978, 0.0
      %v3011 = vmax.f32 %v2979, 0.0
      %v3012 = vmax.f32 %v2980, 0.0
      %v3013 = vmax.f32 %v2981, 0.0
      %v3014 = vmax.f32 %v2982, 0.0
      %v3015 = vmax.f32 %v2983, 0.0
      %v3016 = vmax.f32 %v2984, 0.0
      %v3017 = vmax.f32 %v2985, 0.0
      %v3018 = vmax.f32 %v2986, 0.0
      %v3019 = vmax.f32 %v2987, 0.0
      %v3020 = vmax.f32 %v2988, 0.0
      %v3021 = vmax.f32 %v2989, 0.0
      %v3022 = vmax.f32 %v2990, 0.0
      %v3023 = vmax.f32 %v2991, 0.0
      %v3024 = vmax.f32 %v2992, 0.0
      %v3025 = vmax.f32 %v2993, 0.0
      %v3026 = vmax.f32 %v2994, 0.0
      %v3027 = vmax.f32 %v2995, 0.0
      %v3028 = vmax.f32 %v2996, 0.0
      %v3029 = vmax.f32 %v2997, 0.0
      %v3030 = vmax.f32 %v2998, 0.0
      %v3031 = vmax.f32 %v2999, 0.0
      %v3032 = vmax.f32 %v3000, 0.0
      %v3033 = vmax.f32 %v3001, 0.0
      %v3034 = vmax.f32 %v3002, 0.0
      %v3035 = vld [vmem:[%s7] sm:$0x3]
      %v3036 = vld [vmem:[%s8] sm:$0x1]
      %v3038 = vlaneseq
      %v3039 = vshrl.u32 %v3038, 7
      %v3040 = vsub.s32 0, %v3039
      %v3041 = vrot.slane %v3036, %v3040
      %v3043 = vsel %vm1119, %v366, 0
      %v3045 = vsel %vm1119, %v367, 0
      %v3047 = vsel %vm1119, %v368, 0
      %v3049 = vsel %vm1119, %v369, 0
      %v3051 = vsel %vm1119, %v370, 0
      %v3053 = vsel %vm1119, %v371, 0
      %v3055 = vsel %vm1119, %v372, 0
      %v3057 = vsel %vm1119, %v373, 0
      %v3059 = vsel %vm1119, %v374, 0
      %v3061 = vsel %vm1119, %v375, 0
      %v3063 = vsel %vm1119, %v376, 0
      %v3065 = vsel %vm1119, %v377, 0
      %v3067 = vsel %vm1119, %v378, 0
      %v3069 = vsel %vm1119, %v379, 0
      %v3071 = vsel %vm1119, %v380, 0
      %v3073 = vsel %vm1119, %v381, 0
      %v3076 = vsel %vm1436, %v3035, 0
      %3078 = vmatprep.subr.bf16.mxu0 0
      %3079 = vmatpush1.bf16.msra.mxu0 0
      %3080 = vmatprep.subr.bf16.mxu0 0
      %3081 = vmatpush1.bf16.msra.mxu0 0
      %3082 = vmatprep.subr.bf16.mxu0 0
      %3083 = vmatpush1.bf16.msra.mxu0 0
      %3084 = vmatprep.subr.bf16.mxu0 0
      %3085 = vmatpush1.bf16.msra.mxu0 0
      %3086 = vmatprep.subr.bf16.mxu0 0
      %3087 = vmatpush1.bf16.msra.mxu0 0
      %3088 = vmatprep.subr.bf16.mxu0 0
      %3089 = vmatpush1.bf16.msra.mxu0 0
      %3090 = vmatprep.subr.bf16.mxu0 0
      %3091 = vmatpush1.bf16.msra.mxu0 0
      %3092 = vmatprep.subr.bf16.mxu0 0
      %3093 = vmatpush1.bf16.msra.mxu0 %v3076
      %3094 = vmatprep.subr.bf16.mxu0 0
      %3095 = vmatpush2.bf16.msra.mxu0 0
      %3096 = vmatprep.subr.bf16.mxu0 0
      %3097 = vmatpush2.bf16.msra.mxu0 0
      %3098 = vmatprep.subr.bf16.mxu0 0
      %3099 = vmatpush2.bf16.msra.mxu0 0
      %3100 = vmatprep.subr.bf16.mxu0 0
      %3101 = vmatpush2.bf16.msra.mxu0 0
      %3102 = vmatprep.subr.bf16.mxu0 0
      %3103 = vmatpush2.bf16.msra.mxu0 0
      %3104 = vmatprep.subr.bf16.mxu0 0
      %3105 = vmatpush2.bf16.msra.mxu0 0
      %3106 = vmatprep.subr.bf16.mxu0 0
      %3107 = vmatpush2.bf16.msra.mxu0 0
      %3108 = vmatprep.subr.bf16.mxu0 0
      %3109 = vmatpush2.bf16.msra.mxu0 0
      %3110 = vmatprep.mubr.bf16.mxu0 0
      %3111 = vmatmul.mubr.bf16.gmra.mxu0 %v3043
      %v3112 = vpop.f32.mrf.mxu0
      %v3113 = vadd.f32 %v3041, %v3112
      %v3114 = vpop.f32.mrf.mxu0
      %v3115 = vpop.f32.mrf.mxu0
      %v3116 = vadd.f32 %v3041, %v3115
      %v3117 = vpop.f32.mrf.mxu0
      %3118 = vmatprep.mubr.bf16.mxu0 0
      %3119 = vmatmul.mubr.bf16.gmra.mxu0 %v3045
      %v3120 = vpop.f32.mrf.mxu0
      %v3121 = vadd.f32 %v3041, %v3120
      %v3122 = vpop.f32.mrf.mxu0
      %v3123 = vpop.f32.mrf.mxu0
      %v3124 = vadd.f32 %v3041, %v3123
      %v3125 = vpop.f32.mrf.mxu0
      %3126 = vmatprep.mubr.bf16.mxu0 0
      %3127 = vmatmul.mubr.bf16.gmra.mxu0 %v3047
      %v3128 = vpop.f32.mrf.mxu0
      %v3129 = vadd.f32 %v3041, %v3128
      %v3130 = vpop.f32.mrf.mxu0
      %v3131 = vpop.f32.mrf.mxu0
      %v3132 = vadd.f32 %v3041, %v3131
      %v3133 = vpop.f32.mrf.mxu0
      %3134 = vmatprep.mubr.bf16.mxu0 0
      %3135 = vmatmul.mubr.bf16.gmra.mxu0 %v3049
      %v3136 = vpop.f32.mrf.mxu0
      %v3137 = vadd.f32 %v3041, %v3136
      %v3138 = vpop.f32.mrf.mxu0
      %v3139 = vpop.f32.mrf.mxu0
      %v3140 = vadd.f32 %v3041, %v3139
      %v3141 = vpop.f32.mrf.mxu0
      %3142 = vmatprep.mubr.bf16.mxu0 0
      %3143 = vmatmul.mubr.bf16.gmra.mxu0 %v3051
      %v3144 = vpop.f32.mrf.mxu0
      %v3145 = vadd.f32 %v3041, %v3144
      %v3146 = vpop.f32.mrf.mxu0
      %v3147 = vpop.f32.mrf.mxu0
      %v3148 = vadd.f32 %v3041, %v3147
      %v3149 = vpop.f32.mrf.mxu0
      %3150 = vmatprep.mubr.bf16.mxu0 0
      %3151 = vmatmul.mubr.bf16.gmra.mxu0 %v3053
      %v3152 = vpop.f32.mrf.mxu0
      %v3153 = vadd.f32 %v3041, %v3152
      %v3154 = vpop.f32.mrf.mxu0
      %v3155 = vpop.f32.mrf.mxu0
      %v3156 = vadd.f32 %v3041, %v3155
      %v3157 = vpop.f32.mrf.mxu0
      %3158 = vmatprep.mubr.bf16.mxu0 0
      %3159 = vmatmul.mubr.bf16.gmra.mxu0 %v3055
      %v3160 = vpop.f32.mrf.mxu0
      %v3161 = vadd.f32 %v3041, %v3160
      %v3162 = vpop.f32.mrf.mxu0
      %v3163 = vpop.f32.mrf.mxu0
      %v3164 = vadd.f32 %v3041, %v3163
      %v3165 = vpop.f32.mrf.mxu0
      %3166 = vmatprep.mubr.bf16.mxu0 0
      %3167 = vmatmul.mubr.bf16.gmra.mxu0 %v3057
      %v3168 = vpop.f32.mrf.mxu0
      %v3169 = vadd.f32 %v3041, %v3168
      %v3170 = vpop.f32.mrf.mxu0
      %v3171 = vpop.f32.mrf.mxu0
      %v3172 = vadd.f32 %v3041, %v3171
      %v3173 = vpop.f32.mrf.mxu0
      %3174 = vmatprep.mubr.bf16.mxu0 0
      %3175 = vmatmul.mubr.bf16.gmra.mxu0 %v3059
      %v3176 = vpop.f32.mrf.mxu0
      %v3177 = vadd.f32 %v3041, %v3176
      %v3178 = vpop.f32.mrf.mxu0
      %v3179 = vpop.f32.mrf.mxu0
      %v3180 = vadd.f32 %v3041, %v3179
      %v3181 = vpop.f32.mrf.mxu0
      %3182 = vmatprep.mubr.bf16.mxu0 0
      %3183 = vmatmul.mubr.bf16.gmra.mxu0 %v3061
      %v3184 = vpop.f32.mrf.mxu0
      %v3185 = vadd.f32 %v3041, %v3184
      %v3186 = vpop.f32.mrf.mxu0
      %v3187 = vpop.f32.mrf.mxu0
      %v3188 = vadd.f32 %v3041, %v3187
      %v3189 = vpop.f32.mrf.mxu0
      %3190 = vmatprep.mubr.bf16.mxu0 0
      %3191 = vmatmul.mubr.bf16.gmra.mxu0 %v3063
      %v3192 = vpop.f32.mrf.mxu0
      %v3193 = vadd.f32 %v3041, %v3192
      %v3194 = vpop.f32.mrf.mxu0
      %v3195 = vpop.f32.mrf.mxu0
      %v3196 = vadd.f32 %v3041, %v3195
      %v3197 = vpop.f32.mrf.mxu0
      %3198 = vmatprep.mubr.bf16.mxu0 0
      %3199 = vmatmul.mubr.bf16.gmra.mxu0 %v3065
      %v3200 = vpop.f32.mrf.mxu0
      %v3201 = vadd.f32 %v3041, %v3200
      %v3202 = vpop.f32.mrf.mxu0
      %v3203 = vpop.f32.mrf.mxu0
      %v3204 = vadd.f32 %v3041, %v3203
      %v3205 = vpop.f32.mrf.mxu0
      %3206 = vmatprep.mubr.bf16.mxu0 0
      %3207 = vmatmul.mubr.bf16.gmra.mxu0 %v3067
      %v3208 = vpop.f32.mrf.mxu0
      %v3209 = vadd.f32 %v3041, %v3208
      %v3210 = vpop.f32.mrf.mxu0
      %v3211 = vpop.f32.mrf.mxu0
      %v3212 = vadd.f32 %v3041, %v3211
      %v3213 = vpop.f32.mrf.mxu0
      %3214 = vmatprep.mubr.bf16.mxu0 0
      %3215 = vmatmul.mubr.bf16.gmra.mxu0 %v3069
      %v3216 = vpop.f32.mrf.mxu0
      %v3217 = vadd.f32 %v3041, %v3216
      %v3218 = vpop.f32.mrf.mxu0
      %v3219 = vpop.f32.mrf.mxu0
      %v3220 = vadd.f32 %v3041, %v3219
      %v3221 = vpop.f32.mrf.mxu0
      %3222 = vmatprep.mubr.bf16.mxu0 0
      %3223 = vmatmul.mubr.bf16.gmra.mxu0 %v3071
      %v3224 = vpop.f32.mrf.mxu0
      %v3225 = vadd.f32 %v3041, %v3224
      %v3226 = vpop.f32.mrf.mxu0
      %v3227 = vpop.f32.mrf.mxu0
      %v3228 = vadd.f32 %v3041, %v3227
      %v3229 = vpop.f32.mrf.mxu0
      %3230 = vmatprep.mubr.bf16.mxu0 0
      %3231 = vmatmul.mubr.bf16.gmra.mxu0 %v3073
      %v3232 = vpop.f32.mrf.mxu0
      %v3233 = vadd.f32 %v3041, %v3232
      %v3234 = vpop.f32.mrf.mxu0
      %v3235 = vpop.f32.mrf.mxu0
      %v3236 = vadd.f32 %v3041, %v3235
      %v3237 = vpop.f32.mrf.mxu0
      %3238 = vdwg.mxu0
      %v3239 = vadd.f32 %v3003, %v3113
      %v3240 = vadd.f32 %v3004, %v3116
      %v3241 = vadd.f32 %v3005, %v3121
      %v3242 = vadd.f32 %v3006, %v3124
      %v3243 = vadd.f32 %v3007, %v3129
      %v3244 = vadd.f32 %v3008, %v3132
      %v3245 = vadd.f32 %v3009, %v3137
      %v3246 = vadd.f32 %v3010, %v3140
      %v3247 = vadd.f32 %v3011, %v3145
      %v3248 = vadd.f32 %v3012, %v3148
      %v3249 = vadd.f32 %v3013, %v3153
      %v3250 = vadd.f32 %v3014, %v3156
      %v3251 = vadd.f32 %v3015, %v3161
      %v3252 = vadd.f32 %v3016, %v3164
      %v3253 = vadd.f32 %v3017, %v3169
      %v3254 = vadd.f32 %v3018, %v3172
      %v3255 = vadd.f32 %v3019, %v3177
      %v3256 = vadd.f32 %v3020, %v3180
      %v3257 = vadd.f32 %v3021, %v3185
      %v3258 = vadd.f32 %v3022, %v3188
      %v3259 = vadd.f32 %v3023, %v3193
      %v3260 = vadd.f32 %v3024, %v3196
      %v3261 = vadd.f32 %v3025, %v3201
      %v3262 = vadd.f32 %v3026, %v3204
      %v3263 = vadd.f32 %v3027, %v3209
      %v3264 = vadd.f32 %v3028, %v3212
      %v3265 = vadd.f32 %v3029, %v3217
      %v3266 = vadd.f32 %v3030, %v3220
      %v3267 = vadd.f32 %v3031, %v3225
      %v3268 = vadd.f32 %v3032, %v3228
      %v3269 = vadd.f32 %v3033, %v3233
      %v3270 = vadd.f32 %v3034, %v3236
      %3271 = vst.msk [vmem:[%s332] sm:$0xff] %vm1152, %v3239
      %3272 = vst.msk [vmem:[%s332 + $0x8] sm:$0xff] %vm1152, %v3240
      %3273 = vst.msk [vmem:[%s332 + $0x10] sm:$0xff] %vm1152, %v3241
      %3274 = vst.msk [vmem:[%s332 + $0x18] sm:$0xff] %vm1152, %v3242
      %3275 = vst.msk [vmem:[%s332 + $0x20] sm:$0xff] %vm1152, %v3243
      %3276 = vst.msk [vmem:[%s332 + $0x28] sm:$0xff] %vm1152, %v3244
      %3277 = vst.msk [vmem:[%s332 + $0x30] sm:$0xff] %vm1152, %v3245
      %3278 = vst.msk [vmem:[%s332 + $0x38] sm:$0xff] %vm1152, %v3246
      %3279 = vst.msk [vmem:[%s332 + $0x40] sm:$0xff] %vm1152, %v3247
      %3280 = vst.msk [vmem:[%s332 + $0x48] sm:$0xff] %vm1152, %v3248
      %3281 = vst.msk [vmem:[%s332 + $0x50] sm:$0xff] %vm1152, %v3249
      %3282 = vst.msk [vmem:[%s332 + $0x58] sm:$0xff] %vm1152, %v3250
      %3283 = vst.msk [vmem:[%s332 + $0x60] sm:$0xff] %vm1152, %v3251
      %3284 = vst.msk [vmem:[%s332 + $0x68] sm:$0xff] %vm1152, %v3252
      %3285 = vst.msk [vmem:[%s332 + $0x70] sm:$0xff] %vm1152, %v3253
      %3286 = vst.msk [vmem:[%s332 + $0x78] sm:$0xff] %vm1152, %v3254
      %3287 = vst.msk [vmem:[%s332 + $0x80] sm:$0xff] %vm1152, %v3255
      %3288 = vst.msk [vmem:[%s332 + $0x88] sm:$0xff] %vm1152, %v3256
      %3289 = vst.msk [vmem:[%s332 + $0x90] sm:$0xff] %vm1152, %v3257
      %3290 = vst.msk [vmem:[%s332 + $0x98] sm:$0xff] %vm1152, %v3258
      %3291 = vst.msk [vmem:[%s332 + $0xa0] sm:$0xff] %vm1152, %v3259
      %3292 = vst.msk [vmem:[%s332 + $0xa8] sm:$0xff] %vm1152, %v3260
      %3293 = vst.msk [vmem:[%s332 + $0xb0] sm:$0xff] %vm1152, %v3261
      %3294 = vst.msk [vmem:[%s332 + $0xb8] sm:$0xff] %vm1152, %v3262
      %3295 = vst.msk [vmem:[%s332 + $0xc0] sm:$0xff] %vm1152, %v3263
      %3296 = vst.msk [vmem:[%s332 + $0xc8] sm:$0xff] %vm1152, %v3264
      %3297 = vst.msk [vmem:[%s332 + $0xd0] sm:$0xff] %vm1152, %v3265
      %3298 = vst.msk [vmem:[%s332 + $0xd8] sm:$0xff] %vm1152, %v3266
      %3299 = vst.msk [vmem:[%s332 + $0xe0] sm:$0xff] %vm1152, %v3267
      %3300 = vst.msk [vmem:[%s332 + $0xe8] sm:$0xff] %vm1152, %v3268
      %3301 = vst.msk [vmem:[%s332 + $0xf0] sm:$0xff] %vm1152, %v3269
      %3302 = vst.msk [vmem:[%s332 + $0xf8] sm:$0xff] %vm1152, %v3270
      %p3303 = scmp.lt.s32.totalorder %s20, 1
      %s3304 = scalar_select %p3303, %s20, 1
      %s3305 = smul.addr %s3304, 32
      %s3306 = smul.addr %s3305, 8
      %s3307 = scalar_lea.vmem %s9, %s3306
      // Predicated region
      $region57: #{tpu_custom_call.1} parent=55 // pred_check
        %p3308 = pneg %p232
      $region58: #{tpu_custom_call.1} parent=55 // pred_check_branch
        %3310 = sbr.rel (%p3308) target = $region60
      $region59: #{tpu_custom_call.1} parent=55 // pred_region
        _
      $region60: #{tpu_custom_call.1} parent=55 // pred_fallthru
        _
    $region56: #{tpu_custom_call.1} parent=5 // pred_fallthru
      _
    %p3311 = scmp.le.s32.totalorder 2, %s15
    // Predicated region
    $region61: #{tpu_custom_call.1} parent=5 // pred_check
      %p3312 = pneg %p3311
    $region62: #{tpu_custom_call.1} parent=5 // pred_check_branch
      %3314 = sbr.rel (%p3312) target = $region64
    $region63: #{tpu_custom_call.1} parent=5 // pred_region
      %s3315 = ssub.s32 %s15, 2
      // Predicated region
      $region65: #{tpu_custom_call.1} parent=63 // pred_check
        %p3316 = pneg %p238
      $region66: #{tpu_custom_call.1} parent=63 // pred_check_branch
        %3318 = sbr.rel (%p3316) target = $region68
      $region67: #{tpu_custom_call.1} parent=63 // pred_region
        %p3319 = scmp.lt.s32.totalorder %s21, 1
        %s3320 = scalar_select %p3319, %s21, 1
        %s3321 = smul.addr %s3320, 32
        %s3322 = smul.addr %s3321, 8
        %s3323 = scalar_lea.vmem %s9, %s3322
      $region68: #{tpu_custom_call.1} parent=63 // pred_fallthru
        _
    $region64: #{tpu_custom_call.1} parent=5 // pred_fallthru
      _
  $region6: #{tpu_custom_call.1} parent=0 // loop_footer
    %s19 = sadd.s32 1, %s15
  $region7: #{tpu_custom_call.1} parent=0 // loop_footer_branch
    %14 = sbr.rel target = $region3
  $region8: #{tpu_custom_call.1} parent=0 // loop_exit
    _

</llo_original>
